<compile_context>
chip_gen: v7x
topology: tpu7x:2x2x1
jax: 0.10.0
libtpu: 0.0.40
codegen_flags: <defaults>
</compile_context>

<pallas_src>
import jax
import jax.numpy as jnp
from jax import lax
from jax.experimental import pallas as pl
from jax.experimental.pallas import tpu as pltpu

D_MODEL = 32
D_INNER = 64
N_HEAD = 4
D_K = 8
D_V = 8
LN_EPS = 1e-5
TEMPERATURE = float(D_K) ** 0.5
NEG_BIAS = -1e9


# ----------------------------- kernel helpers (traced inside the kernel) -----------------------------

def _layer_norm(x, gamma, beta):
    mean = jnp.mean(x, axis=-1, keepdims=True)
    var = jnp.mean((x - mean) ** 2, axis=-1, keepdims=True)
    return (x - mean) * lax.rsqrt(var + LN_EPS) * gamma + beta


# ----------------------------- the Pallas kernel (no grid: single shot) -----------------------------

def decoder_layer_kernel(x_ref, e_ref, npm_ref, sbias_ref, ebias_ref, w_ref, rowp_ref,
                         out_ref, slf_attn_ref, enc_attn_ref):
    D = D_MODEL
    x = x_ref[...]          # (B*Lq, D)
    e = e_ref[...]          # (B*Lk, D)
    npm = npm_ref[...]      # (B*Lq, 1)
    sbias = sbias_ref[...]  # (B*Lq, B*Lq) additive block-diagonal mask bias
    ebias = ebias_ref[...]  # (B*Lq, B*Lk)
    rowp = rowp_ref[...]    # (8, 128) row-vector parameter slab

    # row-vector params (128 lanes per slab row, see pack_params)
    bq_s, bk_s = rowp[0:1, 0:D], rowp[0:1, D:2 * D]
    bq_e, bk_e = rowp[0:1, 2 * D:3 * D], rowp[0:1, 3 * D:4 * D]
    fcb_s, g_s = rowp[1:2, 0:D], rowp[1:2, D:2 * D]
    be_s, fcb_e = rowp[1:2, 2 * D:3 * D], rowp[1:2, 3 * D:4 * D]
    g_e, be_e = rowp[2:3, 0:D], rowp[2:3, D:2 * D]
    b2, g2 = rowp[2:3, 2 * D:3 * D], rowp[2:3, 3 * D:4 * D]
    be2 = rowp[3:4, 0:D]
    b1 = rowp[3:4, D:D + D_INNER]

    inv_t = 1.0 / TEMPERATURE

    def mha(xq, xkv, bias, wq, wk, wvf, bq, bk, fcb, g, be, attn_ref):
        # merged whole-head projections: 3 wide MXU pushes (32/32/128 output lanes)
        q_all = jnp.dot(xq, wq, preferred_element_type=jnp.float32) + bq      # (nq, H*dk)
        k_all = jnp.dot(xkv, wk, preferred_element_type=jnp.float32) + bk     # (nk, H*dk)
        vp_all = jnp.dot(xkv, wvf, preferred_element_type=jnp.float32)        # (nk, H*D)

        attn_blocks = []
        for h in range(N_HEAD):                                  # static unroll (H = 4)
            qh = q_all[:, h * D_K:(h + 1) * D_K]                 # (nq, dk) lane view
            kh = k_all[:, h * D_K:(h + 1) * D_K]                 # (nk, dk)
            s = lax.dot_general(qh, kh, (((1,), (1,)), ((), ())),
                                preferred_element_type=jnp.float32) * inv_t + bias
            m = jnp.max(s, axis=-1, keepdims=True)
            p = jnp.exp(s - m)                                   # masked entries underflow to 0
            # exact reciprocal: approx=True (~2^-12 rel) would break the 1e-5 attention tolerance
            attn_blocks.append(p * pl.reciprocal(jnp.sum(p, axis=-1, keepdims=True), approx=False))

        # heads along lanes -> lane-dense attention store: (16,64) slf / (16,128) enc
        attn2d = jnp.concatenate(attn_blocks, axis=1)            # (nq, H*nk)
        attn_ref[...] = attn2d

        # heads along rows for V -> one (nq, H*nk) @ (H*nk, D) MXU op replaces 4 small
        # attn@v matmuls plus the cross-head sum
        vp2d = jnp.concatenate(
            [vp_all[:, h * D:(h + 1) * D] for h in range(N_HEAD)], axis=0)    # (H*nk, D)
        o = jnp.dot(attn2d, vp2d, preferred_element_type=jnp.float32)         # (nq, D)
        # fcb already contains the folded bv @ Wfc term (softmax rows sum to 1)
        out = o + fcb + xq
        return _layer_norm(out, g, be)

    # weight slab rows (see pack_params): every block starts at lane 0
    out1 = mha(x, x, sbias,
               w_ref[0:D, 0:D], w_ref[D:2 * D, 0:D], w_ref[2 * D:3 * D, 0:N_HEAD * D],
               bq_s, bk_s, fcb_s, g_s, be_s, slf_attn_ref)
    out1 = out1 * npm

    out2 = mha(out1, e, ebias,
               w_ref[3 * D:4 * D, 0:D], w_ref[4 * D:5 * D, 0:D], w_ref[5 * D:6 * D, 0:N_HEAD * D],
               bq_e, bk_e, fcb_e, g_e, be_e, enc_attn_ref)
    out2 = out2 * npm

    # position-wise FFN (Conv1d kernel_size=1 == Linear); w2 kept in natural (D_inner, D) orientation
    w1 = w_ref[6 * D:7 * D, 0:D_INNER]
    w2 = w_ref[7 * D:7 * D + D_INNER, 0:D]
    h1 = jnp.maximum(jnp.dot(out2, w1, preferred_element_type=jnp.float32) + b1, 0.0)
    h2 = jnp.dot(h1, w2, preferred_element_type=jnp.float32) + b2
    out_ref[...] = _layer_norm(h2 + out2, g2, be2) * npm


# ----------------------------- host-side parameter packing (call once) -----------------------------

def pack_params(params):
    """Coalesce the 26 tiny parameter tensors into two 128-lane-wide slabs."""
    slf_p, enc_p, ffn_p = params[:10], params[10:20], params[20:26]
    hi = lax.Precision.HIGHEST

    def mha_slabs(p):
        wq, bq, wk, bk, wv, bv, fcw, fcb, g, be = p
        # fold per-head V projection with the output FC:  Wvf_all[:, h*D:(h+1)*D] = Wv_h @ Wfc_h
        wvh = wv.reshape(D_MODEL, N_HEAD, D_V).transpose(1, 0, 2)             # (H, D, dv)
        fcwh = fcw.reshape(N_HEAD, D_V, D_MODEL)                              # (H, dv, D)
        wvf = jnp.einsum('hdv,hvm->hdm', wvh, fcwh, precision=hi)             # (H, D, D)
        wvf_all = wvf.transpose(1, 0, 2).reshape(D_MODEL, N_HEAD * D_MODEL)   # (D, H*D)
        # V bias folded into the FC bias (attention rows sum to 1)
        fcb_eff = fcb + jnp.matmul(bv, fcw, precision=hi)                     # (1, D)
        return wq, wk, wvf_all, bq, bk, fcb_eff, g, be

    wq_s, wk_s, wvf_s, bq_s, bk_s, fcb_s, g_s, be_s = mha_slabs(slf_p)
    wq_e, wk_e, wvf_e, bq_e, bk_e, fcb_e, g_e, be_e = mha_slabs(enc_p)
    w1, b1, w2, b2, g2, be2 = ffn_p

    def padw(w):          # pad a weight block to 128 lanes (content starts at lane 0)
        return jnp.pad(w, ((0, 0), (0, 128 - w.shape[1])))

    wslab = jnp.concatenate(
        [padw(wq_s), padw(wk_s), wvf_s,
         padw(wq_e), padw(wk_e), wvf_e,
         padw(w1), padw(w2)], axis=0).astype(jnp.float32)                     # (288, 128)

    def rowcat(vs):       # concatenate row vectors into one 128-lane slab row
        row = jnp.concatenate(vs, axis=1)
        return jnp.pad(row, ((0, 0), (0, 128 - row.shape[1])))

    rowp = jnp.concatenate([
        rowcat([bq_s, bk_s, bq_e, bk_e]),
        rowcat([fcb_s, g_s, be_s, fcb_e]),
        rowcat([g_e, be_e, b2, g2]),
        rowcat([be2, b1]),
        jnp.zeros((4, 128), jnp.float32)], axis=0).astype(jnp.float32)        # (8, 128)

    return wslab, rowp


# ----------------------------- mask / output plumbing -----------------------------

def _block_diag_bias(mask):
    """(B, Lq, Lk) nonzero-is-masked mask -> (B*Lq, B*Lk) additive bias (cross-batch blocked)."""
    b, lq, lk = mask.shape
    inner = jnp.where(mask > 0, NEG_BIAS, 0.0).astype(jnp.float32)[:, :, None, :]   # (B,Lq,1,Lk)
    same = jnp.eye(b, dtype=jnp.float32)[:, None, :, None]                          # (B,1,B,1)
    full = jnp.where(same > 0, inner, NEG_BIAS)                                     # (B,Lq,B,Lk)
    return full.reshape(b * lq, b * lk)


def _extract_block_diag(attn_full, b, lq, lk):
    """(B*Lq, H*B*Lk) lane-dense -> (H*B, Lq, Lk) PyTorch layout via a single einsum diagonal."""
    a = attn_full.reshape(b, lq, N_HEAD, b, lk)
    return jnp.einsum('bqhbk->hbqk', a).reshape(N_HEAD * b, lq, lk)


# ----------------------------- wrapper -----------------------------

@jax.jit
def decoder_layer(dec_input, enc_output, non_pad_mask, slf_attn_mask, dec_enc_attn_mask,
                  wslab, rowp):
    B, Lq, D = dec_input.shape
    Lk = enc_output.shape[1]
    BLq, BLk = B * Lq, B * Lk

    x = dec_input.reshape(BLq, D)
    e = enc_output.reshape(BLk, D)
    npm = non_pad_mask.reshape(BLq, 1)
    sbias = _block_diag_bias(slf_attn_mask)                      # (BLq, BLq)
    ebias = _block_diag_bias(dec_enc_attn_mask)                  # (BLq, BLk)

    inputs = (x, e, npm, sbias, ebias, wslab, rowp)
    out_shape = (
        jax.ShapeDtypeStruct((BLq, D), jnp.float32),
        jax.ShapeDtypeStruct((BLq, N_HEAD * BLq), jnp.float32),  # lane-dense attn maps
        jax.ShapeDtypeStruct((BLq, N_HEAD * BLk), jnp.float32),
    )
    vmem = pl.BlockSpec(memory_space=pltpu.MemorySpace.VMEM)

    dec_flat, slf_full, enc_full = pl.pallas_call(
        decoder_layer_kernel,
        out_shape=out_shape,
        in_specs=[vmem] * len(inputs),
        out_specs=(vmem, vmem, vmem),
    )(*inputs)

    dec_out = dec_flat.reshape(B, Lq, D)
    slf_attn = _extract_block_diag(slf_full, B, Lq, Lq)
    enc_attn = _extract_block_diag(enc_full, B, Lq, Lk)
    return dec_out, slf_attn, enc_attn


# ----------------------------- deterministic parameter init -----------------------------

def init_params(key):
    def mha_params(k):
        ks = jax.random.split(k, 4)
        s_qk = (2.0 / (D_MODEL + D_K)) ** 0.5
        s_v = (2.0 / (D_MODEL + D_V)) ** 0.5
        wq = jax.random.normal(ks[0], (D_MODEL, N_HEAD * D_K), jnp.float32) * s_qk
        wk = jax.random.normal(ks[1], (D_MODEL, N_HEAD * D_K), jnp.float32) * s_qk
        wv = jax.random.normal(ks[2], (D_MODEL, N_HEAD * D_V), jnp.float32) * s_v
        fcw = jax.random.normal(ks[3], (N_HEAD * D_V, D_MODEL), jnp.float32) * \
            (2.0 / (N_HEAD * D_V + D_MODEL)) ** 0.5
        bq = jnp.zeros((1, N_HEAD * D_K), jnp.float32)
        bk = jnp.zeros((1, N_HEAD * D_K), jnp.float32)
        bv = jnp.zeros((1, N_HEAD * D_V), jnp.float32)
        fcb = jnp.zeros((1, D_MODEL), jnp.float32)
        g = jnp.ones((1, D_MODEL), jnp.float32)
        be = jnp.zeros((1, D_MODEL), jnp.float32)
        return [wq, bq, wk, bk, wv, bv, fcw, fcb, g, be]

    k_slf, k_enc, k_ffn = jax.random.split(key, 3)
    slf = mha_params(k_slf)
    enc = mha_params(k_enc)
    kf1, kf2 = jax.random.split(k_ffn)
    w1 = jax.random.normal(kf1, (D_MODEL, D_INNER), jnp.float32) * (2.0 / (D_MODEL + D_INNER)) ** 0.5
    b1 = jnp.zeros((1, D_INNER), jnp.float32)
    w2 = jax.random.normal(kf2, (D_INNER, D_MODEL), jnp.float32) * (2.0 / (D_MODEL + D_INNER)) ** 0.5
    b2 = jnp.zeros((1, D_MODEL), jnp.float32)
    g2 = jnp.ones((1, D_MODEL), jnp.float32)
    be2 = jnp.zeros((1, D_MODEL), jnp.float32)
    ffn = [w1, b1, w2, b2, g2, be2]
    return slf + enc + ffn


# ----------------------------- pure-JAX reference (for sanity check) -----------------------------

def _mha_ref(xq, xkv, mask, p):
    wq, bq, wk, bk, wv, bv, fcw, fcb, g, be = p
    B, Lq, _ = xq.shape
    Lk = xkv.shape[1]
    q = (xq @ wq + bq).reshape(B, Lq, N_HEAD, D_K)
    k = (xkv @ wk + bk).reshape(B, Lk, N_HEAD, D_K)
    v = (xkv @ wv + bv).reshape(B, Lk, N_HEAD, D_V)
    scores = jnp.einsum('bqhd,bkhd->hbqk', q, k) / TEMPERATURE
    scores = jnp.where(mask[None] > 0, -jnp.inf, scores)
    attn = jax.nn.softmax(scores, axis=-1)
    o = jnp.einsum('hbqk,bkhd->bqhd', attn, v).reshape(B, Lq, N_HEAD * D_V)
    out = o @ fcw + fcb + xq
    mean = out.mean(-1, keepdims=True)
    var = ((out - mean) ** 2).mean(-1, keepdims=True)
    out = (out - mean) / jnp.sqrt(var + LN_EPS) * g + be
    return out, attn.reshape(N_HEAD * B, Lq, Lk)


def decoder_layer_ref(dec_input, enc_output, npm, slf_mask, enc_mask, params):
    slf_p, enc_p, ffn_p = params[:10], params[10:20], params[20:26]
    out, slf_attn = _mha_ref(dec_input, dec_input, slf_mask, slf_p)
    out = out * npm
    out, enc_attn = _mha_ref(out, enc_output, enc_mask, enc_p)
    out = out * npm
    w1, b1, w2, b2, g2, be2 = ffn_p
    h = jnp.maximum(out @ w1 + b1, 0.0) @ w2 + b2 + out
    mean = h.mean(-1, keepdims=True)
    var = ((h - mean) ** 2).mean(-1, keepdims=True)
    out = ((h - mean) / jnp.sqrt(var + LN_EPS) * g2 + be2) * npm
    return out, slf_attn, enc_attn


# ----------------------------- main -----------------------------

if __name__ == "__main__":
    B, LQ, LK = 2, 8, 16
    key = jax.random.PRNGKey(0)
    k_dec, k_enc, k_par = jax.random.split(key, 3)

    dec_input = jax.random.normal(k_dec, (B, LQ, D_MODEL), jnp.float32)
    enc_output = jax.random.normal(k_enc, (B, LK, D_MODEL), jnp.float32)

    # non-pad mask: last 2 decoder positions are padding
    non_pad_mask = (jnp.arange(LQ) < LQ - 2).astype(jnp.float32)[None, :, None]
    non_pad_mask = jnp.tile(non_pad_mask, (B, 1, 1))
    # self-attention mask: causal (mask future positions); nonzero => masked
    slf_attn_mask = jnp.tile(
        (jnp.arange(LQ)[None, :] > jnp.arange(LQ)[:, None]).astype(jnp.float32)[None], (B, 1, 1))
    # dec-enc attention mask: last 4 encoder positions are padding
    dec_enc_attn_mask = jnp.tile(
        (jnp.arange(LK) >= LK - 4).astype(jnp.float32)[None, None, :], (B, LQ, 1))

    params = init_params(k_par)
    # hoisted out of the per-call path: parameter slabs are packed exactly once
    wslab, rowp = pack_params(params)
    jax.block_until_ready((wslab, rowp))

    dec_out, slf_attn, enc_attn = decoder_layer(
        dec_input, enc_output, non_pad_mask, slf_attn_mask, dec_enc_attn_mask, wslab, rowp)
    jax.block_until_ready((dec_out, slf_attn, enc_attn))

    # sanity check against a pure-JAX reference
    ref_out, ref_slf, ref_enc = decoder_layer_ref(
        dec_input, enc_output, non_pad_mask, slf_attn_mask, dec_enc_attn_mask, params)
    assert dec_out.shape == (B, LQ, D_MODEL)
    assert slf_attn.shape == (N_HEAD * B, LQ, LQ)
    assert enc_attn.shape == (N_HEAD * B, LQ, LK)
    assert jnp.allclose(dec_out, ref_out, atol=1e-4), "dec_output mismatch"
    assert jnp.allclose(slf_attn, ref_slf, atol=1e-5), "slf_attn mismatch"
    assert jnp.allclose(enc_attn, ref_enc, atol=1e-5), "enc_attn mismatch"

    print("KERNEL_OK")
</pallas_src>

<mosaic_0001>
module attributes {stable_mosaic.version = 11 : i64} {
  func.func @decoder_layer_kernel(%arg0: memref<16x32xf32, #tpu.memory_space<vmem>>, %arg1: memref<32x32xf32, #tpu.memory_space<vmem>>, %arg2: memref<16x1xf32, #tpu.memory_space<vmem>>, %arg3: memref<16x16xf32, #tpu.memory_space<vmem>>, %arg4: memref<16x32xf32, #tpu.memory_space<vmem>>, %arg5: memref<288x128xf32, #tpu.memory_space<vmem>>, %arg6: memref<8x128xf32, #tpu.memory_space<vmem>>, %arg7: memref<16x32xf32, #tpu.memory_space<vmem>>, %arg8: memref<16x64xf32, #tpu.memory_space<vmem>>, %arg9: memref<16x128xf32, #tpu.memory_space<vmem>>) attributes {dimension_semantics = [], scalar_prefetch = 0 : i64, scratch_operands = 0 : i64, tpu.core_type = #tpu.core_type<tc>} {
    %c0 = arith.constant 0 : index
    %c0_0 = arith.constant 0 : index
    %0 = vector.load %arg0[%c0, %c0_0] : memref<16x32xf32, #tpu.memory_space<vmem>>, vector<16x32xf32>
    %c0_1 = arith.constant 0 : index
    %c0_2 = arith.constant 0 : index
    %1 = vector.load %arg1[%c0_1, %c0_2] : memref<32x32xf32, #tpu.memory_space<vmem>>, vector<32x32xf32>
    %c0_3 = arith.constant 0 : index
    %c0_4 = arith.constant 0 : index
    %2 = vector.load %arg2[%c0_3, %c0_4] : memref<16x1xf32, #tpu.memory_space<vmem>>, vector<16x1xf32>
    %c0_5 = arith.constant 0 : index
    %c0_6 = arith.constant 0 : index
    %3 = vector.load %arg3[%c0_5, %c0_6] : memref<16x16xf32, #tpu.memory_space<vmem>>, vector<16x16xf32>
    %c0_7 = arith.constant 0 : index
    %c0_8 = arith.constant 0 : index
    %4 = vector.load %arg4[%c0_7, %c0_8] : memref<16x32xf32, #tpu.memory_space<vmem>>, vector<16x32xf32>
    %c0_9 = arith.constant 0 : index
    %c0_10 = arith.constant 0 : index
    %5 = vector.load %arg6[%c0_9, %c0_10] : memref<8x128xf32, #tpu.memory_space<vmem>>, vector<8x128xf32>
    %6 = vector.extract_strided_slice %5 {offsets = [0, 0], sizes = [1, 32], strides = [1, 1]} : vector<8x128xf32> to vector<1x32xf32>
    %7 = vector.extract_strided_slice %5 {offsets = [0, 32], sizes = [1, 32], strides = [1, 1]} : vector<8x128xf32> to vector<1x32xf32>
    %8 = vector.extract_strided_slice %5 {offsets = [0, 64], sizes = [1, 32], strides = [1, 1]} : vector<8x128xf32> to vector<1x32xf32>
    %9 = vector.extract_strided_slice %5 {offsets = [0, 96], sizes = [1, 32], strides = [1, 1]} : vector<8x128xf32> to vector<1x32xf32>
    %10 = vector.extract_strided_slice %5 {offsets = [1, 0], sizes = [1, 32], strides = [1, 1]} : vector<8x128xf32> to vector<1x32xf32>
    %11 = vector.extract_strided_slice %5 {offsets = [1, 32], sizes = [1, 32], strides = [1, 1]} : vector<8x128xf32> to vector<1x32xf32>
    %12 = vector.extract_strided_slice %5 {offsets = [1, 64], sizes = [1, 32], strides = [1, 1]} : vector<8x128xf32> to vector<1x32xf32>
    %13 = vector.extract_strided_slice %5 {offsets = [1, 96], sizes = [1, 32], strides = [1, 1]} : vector<8x128xf32> to vector<1x32xf32>
    %14 = vector.extract_strided_slice %5 {offsets = [2, 0], sizes = [1, 32], strides = [1, 1]} : vector<8x128xf32> to vector<1x32xf32>
    %15 = vector.extract_strided_slice %5 {offsets = [2, 32], sizes = [1, 32], strides = [1, 1]} : vector<8x128xf32> to vector<1x32xf32>
    %16 = vector.extract_strided_slice %5 {offsets = [2, 64], sizes = [1, 32], strides = [1, 1]} : vector<8x128xf32> to vector<1x32xf32>
    %17 = vector.extract_strided_slice %5 {offsets = [2, 96], sizes = [1, 32], strides = [1, 1]} : vector<8x128xf32> to vector<1x32xf32>
    %18 = vector.extract_strided_slice %5 {offsets = [3, 0], sizes = [1, 32], strides = [1, 1]} : vector<8x128xf32> to vector<1x32xf32>
    %19 = vector.extract_strided_slice %5 {offsets = [3, 32], sizes = [1, 64], strides = [1, 1]} : vector<8x128xf32> to vector<1x64xf32>
    %c0_11 = arith.constant 0 : index
    %c0_12 = arith.constant 0 : index
    %20 = vector.load %arg5[%c0_11, %c0_12] : memref<288x128xf32, #tpu.memory_space<vmem>>, vector<32x32xf32>
    %c32 = arith.constant 32 : index
    %c0_13 = arith.constant 0 : index
    %21 = vector.load %arg5[%c32, %c0_13] : memref<288x128xf32, #tpu.memory_space<vmem>>, vector<32x32xf32>
    %c64 = arith.constant 64 : index
    %c0_14 = arith.constant 0 : index
    %22 = vector.load %arg5[%c64, %c0_14] : memref<288x128xf32, #tpu.memory_space<vmem>>, vector<32x128xf32>
    %cst = arith.constant dense<0.000000e+00> : vector<16x32xf32>
    %23 = tpu.matmul %0, %20, %cst {dimension_numbers = #tpu.dot_dimension_numbers<[1], [0], [0], [1], [0, 0, 1, 1], [], []>} : vector<16x32xf32>, vector<32x32xf32>, vector<16x32xf32> -> vector<16x32xf32>
    %24 = vector.broadcast %6 : vector<1x32xf32> to vector<16x32xf32>
    %25 = arith.addf %23, %24 : vector<16x32xf32>
    %cst_15 = arith.constant dense<0.000000e+00> : vector<16x32xf32>
    %26 = tpu.matmul %0, %21, %cst_15 {dimension_numbers = #tpu.dot_dimension_numbers<[1], [0], [0], [1], [0, 0, 1, 1], [], []>} : vector<16x32xf32>, vector<32x32xf32>, vector<16x32xf32> -> vector<16x32xf32>
    %27 = vector.broadcast %7 : vector<1x32xf32> to vector<16x32xf32>
    %28 = arith.addf %26, %27 : vector<16x32xf32>
    %cst_16 = arith.constant dense<0.000000e+00> : vector<16x128xf32>
    %29 = tpu.matmul %0, %22, %cst_16 {dimension_numbers = #tpu.dot_dimension_numbers<[1], [0], [0], [1], [0, 0, 1, 1], [], []>} : vector<16x32xf32>, vector<32x128xf32>, vector<16x128xf32> -> vector<16x128xf32>
    %30 = vector.extract_strided_slice %25 {offsets = [0, 0], sizes = [16, 8], strides = [1, 1]} : vector<16x32xf32> to vector<16x8xf32>
    %31 = vector.extract_strided_slice %28 {offsets = [0, 0], sizes = [16, 8], strides = [1, 1]} : vector<16x32xf32> to vector<16x8xf32>
    %cst_17 = arith.constant dense<0.000000e+00> : vector<16x16xf32>
    %32 = tpu.matmul %30, %31, %cst_17 {dimension_numbers = #tpu.dot_dimension_numbers<[1], [1], [0], [0], [0, 0, 1, 0], [], []>} : vector<16x8xf32>, vector<16x8xf32>, vector<16x16xf32> -> vector<16x16xf32>
    %cst_18 = arith.constant 0.353553385 : f32
    %33 = vector.broadcast %cst_18 : f32 to vector<16x16xf32>
    %34 = arith.mulf %32, %33 : vector<16x16xf32>
    %35 = arith.addf %34, %3 : vector<16x16xf32>
    %cst_19 = arith.constant dense<0xFF800000> : vector<16xf32>
    %36 = vector.multi_reduction <maximumf>, %35, %cst_19 [1] : vector<16x16xf32> to vector<16xf32>
    %37 = vector.shape_cast %36 : vector<16xf32> to vector<16x1xf32>
    %38 = vector.broadcast %37 : vector<16x1xf32> to vector<16x16xf32>
    %39 = arith.subf %35, %38 : vector<16x16xf32>
    %40 = math.exp %39 : vector<16x16xf32>
    %cst_20 = arith.constant dense<0.000000e+00> : vector<16xf32>
    %41 = vector.multi_reduction <add>, %40, %cst_20 [1] : vector<16x16xf32> to vector<16xf32>
    %42 = vector.shape_cast %41 : vector<16xf32> to vector<16x1xf32>
    %43 = tpu.reciprocal %42 : vector<16x1xf32> -> vector<16x1xf32>
    %44 = vector.broadcast %43 : vector<16x1xf32> to vector<16x16xf32>
    %45 = arith.mulf %40, %44 : vector<16x16xf32>
    %46 = vector.extract_strided_slice %25 {offsets = [0, 8], sizes = [16, 8], strides = [1, 1]} : vector<16x32xf32> to vector<16x8xf32>
    %47 = vector.extract_strided_slice %28 {offsets = [0, 8], sizes = [16, 8], strides = [1, 1]} : vector<16x32xf32> to vector<16x8xf32>
    %cst_21 = arith.constant dense<0.000000e+00> : vector<16x16xf32>
    %48 = tpu.matmul %46, %47, %cst_21 {dimension_numbers = #tpu.dot_dimension_numbers<[1], [1], [0], [0], [0, 0, 1, 0], [], []>} : vector<16x8xf32>, vector<16x8xf32>, vector<16x16xf32> -> vector<16x16xf32>
    %cst_22 = arith.constant 0.353553385 : f32
    %49 = vector.broadcast %cst_22 : f32 to vector<16x16xf32>
    %50 = arith.mulf %48, %49 : vector<16x16xf32>
    %51 = arith.addf %50, %3 : vector<16x16xf32>
    %cst_23 = arith.constant dense<0xFF800000> : vector<16xf32>
    %52 = vector.multi_reduction <maximumf>, %51, %cst_23 [1] : vector<16x16xf32> to vector<16xf32>
    %53 = vector.shape_cast %52 : vector<16xf32> to vector<16x1xf32>
    %54 = vector.broadcast %53 : vector<16x1xf32> to vector<16x16xf32>
    %55 = arith.subf %51, %54 : vector<16x16xf32>
    %56 = math.exp %55 : vector<16x16xf32>
    %cst_24 = arith.constant dense<0.000000e+00> : vector<16xf32>
    %57 = vector.multi_reduction <add>, %56, %cst_24 [1] : vector<16x16xf32> to vector<16xf32>
    %58 = vector.shape_cast %57 : vector<16xf32> to vector<16x1xf32>
    %59 = tpu.reciprocal %58 : vector<16x1xf32> -> vector<16x1xf32>
    %60 = vector.broadcast %59 : vector<16x1xf32> to vector<16x16xf32>
    %61 = arith.mulf %56, %60 : vector<16x16xf32>
    %62 = vector.extract_strided_slice %25 {offsets = [0, 16], sizes = [16, 8], strides = [1, 1]} : vector<16x32xf32> to vector<16x8xf32>
    %63 = vector.extract_strided_slice %28 {offsets = [0, 16], sizes = [16, 8], strides = [1, 1]} : vector<16x32xf32> to vector<16x8xf32>
    %cst_25 = arith.constant dense<0.000000e+00> : vector<16x16xf32>
    %64 = tpu.matmul %62, %63, %cst_25 {dimension_numbers = #tpu.dot_dimension_numbers<[1], [1], [0], [0], [0, 0, 1, 0], [], []>} : vector<16x8xf32>, vector<16x8xf32>, vector<16x16xf32> -> vector<16x16xf32>
    %cst_26 = arith.constant 0.353553385 : f32
    %65 = vector.broadcast %cst_26 : f32 to vector<16x16xf32>
    %66 = arith.mulf %64, %65 : vector<16x16xf32>
    %67 = arith.addf %66, %3 : vector<16x16xf32>
    %cst_27 = arith.constant dense<0xFF800000> : vector<16xf32>
    %68 = vector.multi_reduction <maximumf>, %67, %cst_27 [1] : vector<16x16xf32> to vector<16xf32>
    %69 = vector.shape_cast %68 : vector<16xf32> to vector<16x1xf32>
    %70 = vector.broadcast %69 : vector<16x1xf32> to vector<16x16xf32>
    %71 = arith.subf %67, %70 : vector<16x16xf32>
    %72 = math.exp %71 : vector<16x16xf32>
    %cst_28 = arith.constant dense<0.000000e+00> : vector<16xf32>
    %73 = vector.multi_reduction <add>, %72, %cst_28 [1] : vector<16x16xf32> to vector<16xf32>
    %74 = vector.shape_cast %73 : vector<16xf32> to vector<16x1xf32>
    %75 = tpu.reciprocal %74 : vector<16x1xf32> -> vector<16x1xf32>
    %76 = vector.broadcast %75 : vector<16x1xf32> to vector<16x16xf32>
    %77 = arith.mulf %72, %76 : vector<16x16xf32>
    %78 = vector.extract_strided_slice %25 {offsets = [0, 24], sizes = [16, 8], strides = [1, 1]} : vector<16x32xf32> to vector<16x8xf32>
    %79 = vector.extract_strided_slice %28 {offsets = [0, 24], sizes = [16, 8], strides = [1, 1]} : vector<16x32xf32> to vector<16x8xf32>
    %cst_29 = arith.constant dense<0.000000e+00> : vector<16x16xf32>
    %80 = tpu.matmul %78, %79, %cst_29 {dimension_numbers = #tpu.dot_dimension_numbers<[1], [1], [0], [0], [0, 0, 1, 0], [], []>} : vector<16x8xf32>, vector<16x8xf32>, vector<16x16xf32> -> vector<16x16xf32>
    %cst_30 = arith.constant 0.353553385 : f32
    %81 = vector.broadcast %cst_30 : f32 to vector<16x16xf32>
    %82 = arith.mulf %80, %81 : vector<16x16xf32>
    %83 = arith.addf %82, %3 : vector<16x16xf32>
    %cst_31 = arith.constant dense<0xFF800000> : vector<16xf32>
    %84 = vector.multi_reduction <maximumf>, %83, %cst_31 [1] : vector<16x16xf32> to vector<16xf32>
    %85 = vector.shape_cast %84 : vector<16xf32> to vector<16x1xf32>
    %86 = vector.broadcast %85 : vector<16x1xf32> to vector<16x16xf32>
    %87 = arith.subf %83, %86 : vector<16x16xf32>
    %88 = math.exp %87 : vector<16x16xf32>
    %cst_32 = arith.constant dense<0.000000e+00> : vector<16xf32>
    %89 = vector.multi_reduction <add>, %88, %cst_32 [1] : vector<16x16xf32> to vector<16xf32>
    %90 = vector.shape_cast %89 : vector<16xf32> to vector<16x1xf32>
    %91 = tpu.reciprocal %90 : vector<16x1xf32> -> vector<16x1xf32>
    %92 = vector.broadcast %91 : vector<16x1xf32> to vector<16x16xf32>
    %93 = arith.mulf %88, %92 : vector<16x16xf32>
    %94 = tpu.concatenate %45, %61, %77, %93 in 1 : vector<16x16xf32>, vector<16x16xf32>, vector<16x16xf32>, vector<16x16xf32> -> vector<16x64xf32>
    %c0_33 = arith.constant 0 : index
    %c0_34 = arith.constant 0 : index
    %95 = vector.load %arg8[%c0_33, %c0_34] : memref<16x64xf32, #tpu.memory_space<vmem>>, vector<16x64xf32>
    tpu.vector_store %arg8[%c0_33, %c0_34], %94 {strides = array<i32>} : memref<16x64xf32, #tpu.memory_space<vmem>>, vector<16x64xf32>,
    %96 = vector.extract_strided_slice %29 {offsets = [0, 0], sizes = [16, 32], strides = [1, 1]} : vector<16x128xf32> to vector<16x32xf32>
    %97 = vector.extract_strided_slice %29 {offsets = [0, 32], sizes = [16, 32], strides = [1, 1]} : vector<16x128xf32> to vector<16x32xf32>
    %98 = vector.extract_strided_slice %29 {offsets = [0, 64], sizes = [16, 32], strides = [1, 1]} : vector<16x128xf32> to vector<16x32xf32>
    %99 = vector.extract_strided_slice %29 {offsets = [0, 96], sizes = [16, 32], strides = [1, 1]} : vector<16x128xf32> to vector<16x32xf32>
    %100 = tpu.concatenate %96, %97, %98, %99 in 0 : vector<16x32xf32>, vector<16x32xf32>, vector<16x32xf32>, vector<16x32xf32> -> vector<64x32xf32>
    %cst_35 = arith.constant dense<0.000000e+00> : vector<16x32xf32>
    %101 = tpu.matmul %94, %100, %cst_35 {dimension_numbers = #tpu.dot_dimension_numbers<[1], [0], [0], [1], [0, 0, 1, 1], [], []>} : vector<16x64xf32>, vector<64x32xf32>, vector<16x32xf32> -> vector<16x32xf32>
    %102 = vector.broadcast %10 : vector<1x32xf32> to vector<16x32xf32>
    %103 = arith.addf %101, %102 : vector<16x32xf32>
    %104 = arith.addf %103, %0 : vector<16x32xf32>
    %cst_36 = arith.constant dense<0.000000e+00> : vector<16xf32>
    %105 = vector.multi_reduction <add>, %104, %cst_36 [1] : vector<16x32xf32> to vector<16xf32>
    %106 = vector.shape_cast %105 : vector<16xf32> to vector<16x1xf32>
    %cst_37 = arith.constant 3.200000e+01 : f32
    %107 = vector.broadcast %cst_37 : f32 to vector<16x1xf32>
    %108 = arith.divf %106, %107 : vector<16x1xf32>
    %109 = vector.broadcast %108 : vector<16x1xf32> to vector<16x32xf32>
    %110 = arith.subf %104, %109 : vector<16x32xf32>
    %111 = arith.mulf %110, %110 : vector<16x32xf32>
    %cst_38 = arith.constant dense<0.000000e+00> : vector<16xf32>
    %112 = vector.multi_reduction <add>, %111, %cst_38 [1] : vector<16x32xf32> to vector<16xf32>
    %113 = vector.shape_cast %112 : vector<16xf32> to vector<16x1xf32>
    %cst_39 = arith.constant 3.200000e+01 : f32
    %114 = vector.broadcast %cst_39 : f32 to vector<16x1xf32>
    %115 = arith.divf %113, %114 : vector<16x1xf32>
    %116 = vector.broadcast %108 : vector<16x1xf32> to vector<16x32xf32>
    %117 = arith.subf %104, %116 : vector<16x32xf32>
    %cst_40 = arith.constant 9.99999974E-6 : f32
    %118 = vector.broadcast %cst_40 : f32 to vector<16x1xf32>
    %119 = arith.addf %115, %118 : vector<16x1xf32>
    %120 = math.rsqrt %119 : vector<16x1xf32>
    %121 = vector.broadcast %120 : vector<16x1xf32> to vector<16x32xf32>
    %122 = arith.mulf %117, %121 : vector<16x32xf32>
    %123 = vector.broadcast %11 : vector<1x32xf32> to vector<16x32xf32>
    %124 = arith.mulf %122, %123 : vector<16x32xf32>
    %125 = vector.broadcast %12 : vector<1x32xf32> to vector<16x32xf32>
    %126 = arith.addf %124, %125 : vector<16x32xf32>
    %127 = vector.broadcast %2 : vector<16x1xf32> to vector<16x32xf32>
    %128 = arith.mulf %126, %127 : vector<16x32xf32>
    %c96 = arith.constant 96 : index
    %c0_41 = arith.constant 0 : index
    %129 = vector.load %arg5[%c96, %c0_41] : memref<288x128xf32, #tpu.memory_space<vmem>>, vector<32x32xf32>
    %c128 = arith.constant 128 : index
    %c0_42 = arith.constant 0 : index
    %130 = vector.load %arg5[%c128, %c0_42] : memref<288x128xf32, #tpu.memory_space<vmem>>, vector<32x32xf32>
    %c160 = arith.constant 160 : index
    %c0_43 = arith.constant 0 : index
    %131 = vector.load %arg5[%c160, %c0_43] : memref<288x128xf32, #tpu.memory_space<vmem>>, vector<32x128xf32>
    %cst_44 = arith.constant dense<0.000000e+00> : vector<16x32xf32>
    %132 = tpu.matmul %128, %129, %cst_44 {dimension_numbers = #tpu.dot_dimension_numbers<[1], [0], [0], [1], [0, 0, 1, 1], [], []>} : vector<16x32xf32>, vector<32x32xf32>, vector<16x32xf32> -> vector<16x32xf32>
    %133 = vector.broadcast %8 : vector<1x32xf32> to vector<16x32xf32>
    %134 = arith.addf %132, %133 : vector<16x32xf32>
    %cst_45 = arith.constant dense<0.000000e+00> : vector<32x32xf32>
    %135 = tpu.matmul %1, %130, %cst_45 {dimension_numbers = #tpu.dot_dimension_numbers<[1], [0], [0], [1], [0, 0, 1, 1], [], []>} : vector<32x32xf32>, vector<32x32xf32>, vector<32x32xf32> -> vector<32x32xf32>
    %136 = vector.broadcast %9 : vector<1x32xf32> to vector<32x32xf32>
    %137 = arith.addf %135, %136 : vector<32x32xf32>
    %cst_46 = arith.constant dense<0.000000e+00> : vector<32x128xf32>
    %138 = tpu.matmul %1, %131, %cst_46 {dimension_numbers = #tpu.dot_dimension_numbers<[1], [0], [0], [1], [0, 0, 1, 1], [], []>} : vector<32x32xf32>, vector<32x128xf32>, vector<32x128xf32> -> vector<32x128xf32>
    %139 = vector.extract_strided_slice %134 {offsets = [0, 0], sizes = [16, 8], strides = [1, 1]} : vector<16x32xf32> to vector<16x8xf32>
    %140 = vector.extract_strided_slice %137 {offsets = [0, 0], sizes = [32, 8], strides = [1, 1]} : vector<32x32xf32> to vector<32x8xf32>
    %cst_47 = arith.constant dense<0.000000e+00> : vector<16x32xf32>
    %141 = tpu.matmul %139, %140, %cst_47 {dimension_numbers = #tpu.dot_dimension_numbers<[1], [1], [0], [0], [0, 0, 1, 0], [], []>} : vector<16x8xf32>, vector<32x8xf32>, vector<16x32xf32> -> vector<16x32xf32>
    %cst_48 = arith.constant 0.353553385 : f32
    %142 = vector.broadcast %cst_48 : f32 to vector<16x32xf32>
    %143 = arith.mulf %141, %142 : vector<16x32xf32>
    %144 = arith.addf %143, %4 : vector<16x32xf32>
    %cst_49 = arith.constant dense<0xFF800000> : vector<16xf32>
    %145 = vector.multi_reduction <maximumf>, %144, %cst_49 [1] : vector<16x32xf32> to vector<16xf32>
    %146 = vector.shape_cast %145 : vector<16xf32> to vector<16x1xf32>
    %147 = vector.broadcast %146 : vector<16x1xf32> to vector<16x32xf32>
    %148 = arith.subf %144, %147 : vector<16x32xf32>
    %149 = math.exp %148 : vector<16x32xf32>
    %cst_50 = arith.constant dense<0.000000e+00> : vector<16xf32>
    %150 = vector.multi_reduction <add>, %149, %cst_50 [1] : vector<16x32xf32> to vector<16xf32>
    %151 = vector.shape_cast %150 : vector<16xf32> to vector<16x1xf32>
    %152 = tpu.reciprocal %151 : vector<16x1xf32> -> vector<16x1xf32>
    %153 = vector.broadcast %152 : vector<16x1xf32> to vector<16x32xf32>
    %154 = arith.mulf %149, %153 : vector<16x32xf32>
    %155 = vector.extract_strided_slice %134 {offsets = [0, 8], sizes = [16, 8], strides = [1, 1]} : vector<16x32xf32> to vector<16x8xf32>
    %156 = vector.extract_strided_slice %137 {offsets = [0, 8], sizes = [32, 8], strides = [1, 1]} : vector<32x32xf32> to vector<32x8xf32>
    %cst_51 = arith.constant dense<0.000000e+00> : vector<16x32xf32>
    %157 = tpu.matmul %155, %156, %cst_51 {dimension_numbers = #tpu.dot_dimension_numbers<[1], [1], [0], [0], [0, 0, 1, 0], [], []>} : vector<16x8xf32>, vector<32x8xf32>, vector<16x32xf32> -> vector<16x32xf32>
    %cst_52 = arith.constant 0.353553385 : f32
    %158 = vector.broadcast %cst_52 : f32 to vector<16x32xf32>
    %159 = arith.mulf %157, %158 : vector<16x32xf32>
    %160 = arith.addf %159, %4 : vector<16x32xf32>
    %cst_53 = arith.constant dense<0xFF800000> : vector<16xf32>
    %161 = vector.multi_reduction <maximumf>, %160, %cst_53 [1] : vector<16x32xf32> to vector<16xf32>
    %162 = vector.shape_cast %161 : vector<16xf32> to vector<16x1xf32>
    %163 = vector.broadcast %162 : vector<16x1xf32> to vector<16x32xf32>
    %164 = arith.subf %160, %163 : vector<16x32xf32>
    %165 = math.exp %164 : vector<16x32xf32>
    %cst_54 = arith.constant dense<0.000000e+00> : vector<16xf32>
    %166 = vector.multi_reduction <add>, %165, %cst_54 [1] : vector<16x32xf32> to vector<16xf32>
    %167 = vector.shape_cast %166 : vector<16xf32> to vector<16x1xf32>
    %168 = tpu.reciprocal %167 : vector<16x1xf32> -> vector<16x1xf32>
    %169 = vector.broadcast %168 : vector<16x1xf32> to vector<16x32xf32>
    %170 = arith.mulf %165, %169 : vector<16x32xf32>
    %171 = vector.extract_strided_slice %134 {offsets = [0, 16], sizes = [16, 8], strides = [1, 1]} : vector<16x32xf32> to vector<16x8xf32>
    %172 = vector.extract_strided_slice %137 {offsets = [0, 16], sizes = [32, 8], strides = [1, 1]} : vector<32x32xf32> to vector<32x8xf32>
    %cst_55 = arith.constant dense<0.000000e+00> : vector<16x32xf32>
    %173 = tpu.matmul %171, %172, %cst_55 {dimension_numbers = #tpu.dot_dimension_numbers<[1], [1], [0], [0], [0, 0, 1, 0], [], []>} : vector<16x8xf32>, vector<32x8xf32>, vector<16x32xf32> -> vector<16x32xf32>
    %cst_56 = arith.constant 0.353553385 : f32
    %174 = vector.broadcast %cst_56 : f32 to vector<16x32xf32>
    %175 = arith.mulf %173, %174 : vector<16x32xf32>
    %176 = arith.addf %175, %4 : vector<16x32xf32>
    %cst_57 = arith.constant dense<0xFF800000> : vector<16xf32>
    %177 = vector.multi_reduction <maximumf>, %176, %cst_57 [1] : vector<16x32xf32> to vector<16xf32>
    %178 = vector.shape_cast %177 : vector<16xf32> to vector<16x1xf32>
    %179 = vector.broadcast %178 : vector<16x1xf32> to vector<16x32xf32>
    %180 = arith.subf %176, %179 : vector<16x32xf32>
    %181 = math.exp %180 : vector<16x32xf32>
    %cst_58 = arith.constant dense<0.000000e+00> : vector<16xf32>
    %182 = vector.multi_reduction <add>, %181, %cst_58 [1] : vector<16x32xf32> to vector<16xf32>
    %183 = vector.shape_cast %182 : vector<16xf32> to vector<16x1xf32>
    %184 = tpu.reciprocal %183 : vector<16x1xf32> -> vector<16x1xf32>
    %185 = vector.broadcast %184 : vector<16x1xf32> to vector<16x32xf32>
    %186 = arith.mulf %181, %185 : vector<16x32xf32>
    %187 = vector.extract_strided_slice %134 {offsets = [0, 24], sizes = [16, 8], strides = [1, 1]} : vector<16x32xf32> to vector<16x8xf32>
    %188 = vector.extract_strided_slice %137 {offsets = [0, 24], sizes = [32, 8], strides = [1, 1]} : vector<32x32xf32> to vector<32x8xf32>
    %cst_59 = arith.constant dense<0.000000e+00> : vector<16x32xf32>
    %189 = tpu.matmul %187, %188, %cst_59 {dimension_numbers = #tpu.dot_dimension_numbers<[1], [1], [0], [0], [0, 0, 1, 0], [], []>} : vector<16x8xf32>, vector<32x8xf32>, vector<16x32xf32> -> vector<16x32xf32>
    %cst_60 = arith.constant 0.353553385 : f32
    %190 = vector.broadcast %cst_60 : f32 to vector<16x32xf32>
    %191 = arith.mulf %189, %190 : vector<16x32xf32>
    %192 = arith.addf %191, %4 : vector<16x32xf32>
    %cst_61 = arith.constant dense<0xFF800000> : vector<16xf32>
    %193 = vector.multi_reduction <maximumf>, %192, %cst_61 [1] : vector<16x32xf32> to vector<16xf32>
    %194 = vector.shape_cast %193 : vector<16xf32> to vector<16x1xf32>
    %195 = vector.broadcast %194 : vector<16x1xf32> to vector<16x32xf32>
    %196 = arith.subf %192, %195 : vector<16x32xf32>
    %197 = math.exp %196 : vector<16x32xf32>
    %cst_62 = arith.constant dense<0.000000e+00> : vector<16xf32>
    %198 = vector.multi_reduction <add>, %197, %cst_62 [1] : vector<16x32xf32> to vector<16xf32>
    %199 = vector.shape_cast %198 : vector<16xf32> to vector<16x1xf32>
    %200 = tpu.reciprocal %199 : vector<16x1xf32> -> vector<16x1xf32>
    %201 = vector.broadcast %200 : vector<16x1xf32> to vector<16x32xf32>
    %202 = arith.mulf %197, %201 : vector<16x32xf32>
    %203 = tpu.concatenate %154, %170, %186, %202 in 1 : vector<16x32xf32>, vector<16x32xf32>, vector<16x32xf32>, vector<16x32xf32> -> vector<16x128xf32>
    %c0_63 = arith.constant 0 : index
    %c0_64 = arith.constant 0 : index
    %204 = vector.load %arg9[%c0_63, %c0_64] : memref<16x128xf32, #tpu.memory_space<vmem>>, vector<16x128xf32>
    tpu.vector_store %arg9[%c0_63, %c0_64], %203 {strides = array<i32>} : memref<16x128xf32, #tpu.memory_space<vmem>>, vector<16x128xf32>,
    %205 = vector.extract_strided_slice %138 {offsets = [0, 0], sizes = [32, 32], strides = [1, 1]} : vector<32x128xf32> to vector<32x32xf32>
    %206 = vector.extract_strided_slice %138 {offsets = [0, 32], sizes = [32, 32], strides = [1, 1]} : vector<32x128xf32> to vector<32x32xf32>
    %207 = vector.extract_strided_slice %138 {offsets = [0, 64], sizes = [32, 32], strides = [1, 1]} : vector<32x128xf32> to vector<32x32xf32>
    %208 = vector.extract_strided_slice %138 {offsets = [0, 96], sizes = [32, 32], strides = [1, 1]} : vector<32x128xf32> to vector<32x32xf32>
    %209 = tpu.concatenate %205, %206, %207, %208 in 0 : vector<32x32xf32>, vector<32x32xf32>, vector<32x32xf32>, vector<32x32xf32> -> vector<128x32xf32>
    %cst_65 = arith.constant dense<0.000000e+00> : vector<16x32xf32>
    %210 = tpu.matmul %203, %209, %cst_65 {dimension_numbers = #tpu.dot_dimension_numbers<[1], [0], [0], [1], [0, 0, 1, 1], [], []>} : vector<16x128xf32>, vector<128x32xf32>, vector<16x32xf32> -> vector<16x32xf32>
    %211 = vector.broadcast %13 : vector<1x32xf32> to vector<16x32xf32>
    %212 = arith.addf %210, %211 : vector<16x32xf32>
    %213 = arith.addf %212, %128 : vector<16x32xf32>
    %cst_66 = arith.constant dense<0.000000e+00> : vector<16xf32>
    %214 = vector.multi_reduction <add>, %213, %cst_66 [1] : vector<16x32xf32> to vector<16xf32>
    %215 = vector.shape_cast %214 : vector<16xf32> to vector<16x1xf32>
    %cst_67 = arith.constant 3.200000e+01 : f32
    %216 = vector.broadcast %cst_67 : f32 to vector<16x1xf32>
    %217 = arith.divf %215, %216 : vector<16x1xf32>
    %218 = vector.broadcast %217 : vector<16x1xf32> to vector<16x32xf32>
    %219 = arith.subf %213, %218 : vector<16x32xf32>
    %220 = arith.mulf %219, %219 : vector<16x32xf32>
    %cst_68 = arith.constant dense<0.000000e+00> : vector<16xf32>
    %221 = vector.multi_reduction <add>, %220, %cst_68 [1] : vector<16x32xf32> to vector<16xf32>
    %222 = vector.shape_cast %221 : vector<16xf32> to vector<16x1xf32>
    %cst_69 = arith.constant 3.200000e+01 : f32
    %223 = vector.broadcast %cst_69 : f32 to vector<16x1xf32>
    %224 = arith.divf %222, %223 : vector<16x1xf32>
    %225 = vector.broadcast %217 : vector<16x1xf32> to vector<16x32xf32>
    %226 = arith.subf %213, %225 : vector<16x32xf32>
    %cst_70 = arith.constant 9.99999974E-6 : f32
    %227 = vector.broadcast %cst_70 : f32 to vector<16x1xf32>
    %228 = arith.addf %224, %227 : vector<16x1xf32>
    %229 = math.rsqrt %228 : vector<16x1xf32>
    %230 = vector.broadcast %229 : vector<16x1xf32> to vector<16x32xf32>
    %231 = arith.mulf %226, %230 : vector<16x32xf32>
    %232 = vector.broadcast %14 : vector<1x32xf32> to vector<16x32xf32>
    %233 = arith.mulf %231, %232 : vector<16x32xf32>
    %234 = vector.broadcast %15 : vector<1x32xf32> to vector<16x32xf32>
    %235 = arith.addf %233, %234 : vector<16x32xf32>
    %236 = vector.broadcast %2 : vector<16x1xf32> to vector<16x32xf32>
    %237 = arith.mulf %235, %236 : vector<16x32xf32>
    %c192 = arith.constant 192 : index
    %c0_71 = arith.constant 0 : index
    %238 = vector.load %arg5[%c192, %c0_71] : memref<288x128xf32, #tpu.memory_space<vmem>>, vector<32x64xf32>
    %c224 = arith.constant 224 : index
    %c0_72 = arith.constant 0 : index
    %239 = vector.load %arg5[%c224, %c0_72] : memref<288x128xf32, #tpu.memory_space<vmem>>, vector<64x32xf32>
    %cst_73 = arith.constant dense<0.000000e+00> : vector<16x64xf32>
    %240 = tpu.matmul %237, %238, %cst_73 {dimension_numbers = #tpu.dot_dimension_numbers<[1], [0], [0], [1], [0, 0, 1, 1], [], []>} : vector<16x32xf32>, vector<32x64xf32>, vector<16x64xf32> -> vector<16x64xf32>
    %241 = vector.broadcast %19 : vector<1x64xf32> to vector<16x64xf32>
    %242 = arith.addf %240, %241 : vector<16x64xf32>
    %cst_74 = arith.constant 0.000000e+00 : f32
    %243 = vector.broadcast %cst_74 : f32 to vector<16x64xf32>
    %244 = arith.maximumf %242, %243 : vector<16x64xf32>
    %cst_75 = arith.constant dense<0.000000e+00> : vector<16x32xf32>
    %245 = tpu.matmul %244, %239, %cst_75 {dimension_numbers = #tpu.dot_dimension_numbers<[1], [0], [0], [1], [0, 0, 1, 1], [], []>} : vector<16x64xf32>, vector<64x32xf32>, vector<16x32xf32> -> vector<16x32xf32>
    %246 = vector.broadcast %16 : vector<1x32xf32> to vector<16x32xf32>
    %247 = arith.addf %245, %246 : vector<16x32xf32>
    %248 = arith.addf %247, %237 : vector<16x32xf32>
    %cst_76 = arith.constant dense<0.000000e+00> : vector<16xf32>
    %249 = vector.multi_reduction <add>, %248, %cst_76 [1] : vector<16x32xf32> to vector<16xf32>
    %250 = vector.shape_cast %249 : vector<16xf32> to vector<16x1xf32>
    %cst_77 = arith.constant 3.200000e+01 : f32
    %251 = vector.broadcast %cst_77 : f32 to vector<16x1xf32>
    %252 = arith.divf %250, %251 : vector<16x1xf32>
    %253 = vector.broadcast %252 : vector<16x1xf32> to vector<16x32xf32>
    %254 = arith.subf %248, %253 : vector<16x32xf32>
    %255 = arith.mulf %254, %254 : vector<16x32xf32>
    %cst_78 = arith.constant dense<0.000000e+00> : vector<16xf32>
    %256 = vector.multi_reduction <add>, %255, %cst_78 [1] : vector<16x32xf32> to vector<16xf32>
    %257 = vector.shape_cast %256 : vector<16xf32> to vector<16x1xf32>
    %cst_79 = arith.constant 3.200000e+01 : f32
    %258 = vector.broadcast %cst_79 : f32 to vector<16x1xf32>
    %259 = arith.divf %257, %258 : vector<16x1xf32>
    %260 = vector.broadcast %252 : vector<16x1xf32> to vector<16x32xf32>
    %261 = arith.subf %248, %260 : vector<16x32xf32>
    %cst_80 = arith.constant 9.99999974E-6 : f32
    %262 = vector.broadcast %cst_80 : f32 to vector<16x1xf32>
    %263 = arith.addf %259, %262 : vector<16x1xf32>
    %264 = math.rsqrt %263 : vector<16x1xf32>
    %265 = vector.broadcast %264 : vector<16x1xf32> to vector<16x32xf32>
    %266 = arith.mulf %261, %265 : vector<16x32xf32>
    %267 = vector.broadcast %17 : vector<1x32xf32> to vector<16x32xf32>
    %268 = arith.mulf %266, %267 : vector<16x32xf32>
    %269 = vector.broadcast %18 : vector<1x32xf32> to vector<16x32xf32>
    %270 = arith.addf %268, %269 : vector<16x32xf32>
    %271 = vector.broadcast %2 : vector<16x1xf32> to vector<16x32xf32>
    %272 = arith.mulf %270, %271 : vector<16x32xf32>
    %c0_81 = arith.constant 0 : index
    %c0_82 = arith.constant 0 : index
    %273 = vector.load %arg7[%c0_81, %c0_82] : memref<16x32xf32, #tpu.memory_space<vmem>>, vector<16x32xf32>
    tpu.vector_store %arg7[%c0_81, %c0_82], %272 {strides = array<i32>} : memref<16x32xf32, #tpu.memory_space<vmem>>, vector<16x32xf32>,
    return
  }
}

</mosaic_0001>

<llo_original>
// kernel: decoder_layer.1
$region0: #{decoder_layer.1}
  #allocation0 [shape = 'u32[]', space=smem, size = 0x4, offset = 0x4, fixed_abs, tag = 'smem constant byte address 0x4 - core index']
  #allocation1 [shape = 'u32[144,128]{1,0:T(1,128)}', space=vmem, size = 0x12000, scoped, tag = 'internal scratch']
  %s0 = inlined_call_operand.vmem [shape: f32[16,32], index: 0, kind: input, shape index: {}]
  %s1 = inlined_call_operand.hbm [shape: f32[32,32], index: 1, kind: input, shape index: {}]
  %s2 = inlined_call_operand.vmem [shape: f32[16,1], index: 2, kind: input, shape index: {}]
  %s3 = inlined_call_operand.vmem [shape: f32[16,16], index: 3, kind: input, shape index: {}]
  %s4 = inlined_call_operand.vmem [shape: f32[16,32], index: 4, kind: input, shape index: {}]
  %s5 = inlined_call_operand.vmem [shape: f32[288,128], index: 5, kind: input, shape index: {}]
  %s6 = inlined_call_operand.vmem [shape: f32[8,128], index: 6, kind: input, shape index: {}]
  %s7 = inlined_call_operand.hbm [shape: f32[16,32], index: 7, kind: output, shape index: {0}]
  %s8 = inlined_call_operand.vmem [shape: f32[16,64], index: 8, kind: output, shape index: {1}]
  %s9 = inlined_call_operand.vmem [shape: f32[16,128], index: 9, kind: output, shape index: {2}]
  %10 = xla_tuple %s7, %s8, %s9
  %s11 = sld [smem:[#allocation0]]
  $region58: #{decoder_layer.1} parent=0
    _
  %s13 = ssub.s32 1, %s11
  %s14 = scalar_select 0, %s13, %s11
  $region1: #{decoder_layer.1} parent=0
    #allocation2 [shape = 'u8[16384]{0}', space=vmem, size = 0x4000, scoped, tag = 'input window, operand 1, single buffered']
    #allocation3 [shape = 's32[1]{0}', space=sflag, size = 0x4, scoped, tag = 'scoped memory for decoder_layer.1']
    #allocation4 [shape = 's32[1]{0}', space=sflag, size = 0x4, scoped, tag = 'scoped memory for decoder_layer.1']
    #allocation5 [shape = 'u8[8192]{0}', space=vmem, size = 0x2000, scoped, tag = 'output window, operand 0, single buffered']
    %15 = vsyncpa [#allocation3], 0
    %16 = vsyncpa [#allocation4], 0
    // Predicated region
    $region2: #{decoder_layer.1} parent=1 // pred_check
      _
    $region3: #{decoder_layer.1} parent=1 // pred_check_branch
      %18 = sbr.rel (0) target = $region5
    $region4: #{decoder_layer.1} parent=1 // pred_region
      _
    $region5: #{decoder_layer.1} parent=1 // pred_fallthru
      _
    // Predicated region
    $region6: #{decoder_layer.1} parent=1 // pred_check
      _
    $region7: #{decoder_layer.1} parent=1 // pred_check_branch
      %20 = sbr.rel (0) target = $region9
    $region8: #{decoder_layer.1} parent=1 // pred_region
      %s22 = ssub.s32 512, 512
      %23 = vsyncadd [#allocation3], %s22
      %s24 = sshll.u32 [#allocation2], 4
      %s25 = int_to_ptr.vmem [resolvable:$true] %s24
      %30 = dma.hbm_to_vmem [thread:$0]  %s1, 512, %s25, [#allocation3], 128, 128, 8
    $region9: #{decoder_layer.1} parent=1 // pred_fallthru
      _
    // Predicated region
    $region10: #{decoder_layer.1} parent=1 // pred_check
      _
    $region11: #{decoder_layer.1} parent=1 // pred_check_branch
      %32 = sbr.rel (0) target = $region13
    $region12: #{decoder_layer.1} parent=1 // pred_region
      _
    $region13: #{decoder_layer.1} parent=1 // pred_fallthru
      _
    // Predicated region
    $region14: #{decoder_layer.1} parent=1 // pred_check
      _
    $region15: #{decoder_layer.1} parent=1 // pred_check_branch
      %34 = sbr.rel (0) target = $region17
    $region16: #{decoder_layer.1} parent=1 // pred_region
      _
    $region17: #{decoder_layer.1} parent=1 // pred_fallthru
      _
    // Predicated region
    $region18: #{decoder_layer.1} parent=1 // pred_check
      _
    $region19: #{decoder_layer.1} parent=1 // pred_check_branch
      %36 = sbr.rel (0) target = $region21
    $region20: #{decoder_layer.1} parent=1 // pred_region
      _
    $region21: #{decoder_layer.1} parent=1 // pred_fallthru
      _
    // Predicated region
    $region22: #{decoder_layer.1} parent=1 // pred_check
      _
    $region23: #{decoder_layer.1} parent=1 // pred_check_branch
      %38 = sbr.rel (0) target = $region25
    $region24: #{decoder_layer.1} parent=1 // pred_region
      _
    $region25: #{decoder_layer.1} parent=1 // pred_fallthru
      _
    // Predicated region
    $region26: #{decoder_layer.1} parent=1 // pred_check
      _
    $region27: #{decoder_layer.1} parent=1 // pred_check_branch
      %40 = sbr.rel (0) target = $region29
    $region28: #{decoder_layer.1} parent=1 // pred_region
      _
    $region29: #{decoder_layer.1} parent=1 // pred_fallthru
      _
    // Predicated region
    $region30: #{decoder_layer.1} parent=1 // pred_check
      _
    $region31: #{decoder_layer.1} parent=1 // pred_check_branch
      %42 = sbr.rel (0) target = $region33
    $region32: #{decoder_layer.1} parent=1 // pred_region
      %43 = dma.done [#allocation3], 512
    $region33: #{decoder_layer.1} parent=1 // pred_fallthru
      _
    %v44 = vld [vmem:[%s0] sm:$0xff]
    %v45 = vld [vmem:[%s0 + $0x8] sm:$0xff]
    %v46 = vld [vmem:[#allocation2] sm:$0xff]
    %v47 = vld [vmem:[#allocation2 + $0x8] sm:$0xff]
    %v48 = vld [vmem:[#allocation2 + $0x10] sm:$0xff]
    %v49 = vld [vmem:[#allocation2 + $0x18] sm:$0xff]
    %v50 = vld [vmem:[%s2] sm:$0xff]
    %v51 = vld [vmem:[%s2 + $0x8] sm:$0xff]
    %v52 = vld [vmem:[%s3] sm:$0xff]
    %v53 = vld [vmem:[%s3 + $0x8] sm:$0xff]
    %v54 = vld [vmem:[%s4] sm:$0xff]
    %v55 = vld [vmem:[%s4 + $0x8] sm:$0xff]
    %v56 = vld [vmem:[%s6] sm:$0xff]
    %v57 = vld [vmem:[%s5] sm:$0xff]
    %v58 = vld [vmem:[%s5 + $0x8] sm:$0xff]
    %v59 = vld [vmem:[%s5 + $0x10] sm:$0xff]
    %v60 = vld [vmem:[%s5 + $0x18] sm:$0xff]
    %v61 = vld [vmem:[%s5 + $0x20] sm:$0xff]
    %v62 = vld [vmem:[%s5 + $0x28] sm:$0xff]
    %v63 = vld [vmem:[%s5 + $0x30] sm:$0xff]
    %v64 = vld [vmem:[%s5 + $0x38] sm:$0xff]
    %v65 = vld [vmem:[%s5 + $0x40] sm:$0xff]
    %v66 = vld [vmem:[%s5 + $0x48] sm:$0xff]
    %v67 = vld [vmem:[%s5 + $0x50] sm:$0xff]
    %v68 = vld [vmem:[%s5 + $0x58] sm:$0xff]
    %v69 = vlaneseq
    %v70 = vshrl.u32 %v69, 7
    %v71 = vsub.s32 0, %v70
    %v72 = vrot.slane %v56, %v71
    %vm73 = vcmask 261120
    %v75 = vsel %vm73, %v44, 0
    %v78 = vsel %vm73, %v45, 0
    %80 = vmatprep.subr.mxu0 0.0
    %81 = vmatpush1.msra.mxu0 %v57
    %82 = vmatprep.subr.mxu0 0.0
    %83 = vmatpush1.msra.mxu0 %v58
    %84 = vmatprep.subr.mxu0 0.0
    %85 = vmatpush1.msra.mxu0 %v59
    %86 = vmatprep.subr.mxu0 0.0
    %87 = vmatpush1.msra.mxu0 %v60
    %88 = vmatprep.subr.mxu0 0.0
    %89 = vmatpush1.msra.mxu0 0.0
    %90 = vmatprep.subr.mxu0 0.0
    %91 = vmatpush1.msra.mxu0 0.0
    %92 = vmatprep.subr.mxu0 0.0
    %93 = vmatpush1.msra.mxu0 0.0
    %94 = vmatprep.subr.mxu0 0.0
    %95 = vmatpush1.msra.mxu0 0.0
    %96 = vmatprep.subr.mxu0 0.0
    %97 = vmatpush1.msra.mxu0 0.0
    %98 = vmatprep.subr.mxu0 0.0
    %99 = vmatpush1.msra.mxu0 0.0
    %100 = vmatprep.subr.mxu0 0.0
    %101 = vmatpush1.msra.mxu0 0.0
    %102 = vmatprep.subr.mxu0 0.0
    %103 = vmatpush1.msra.mxu0 0.0
    %104 = vmatprep.subr.mxu0 0.0
    %105 = vmatpush1.msra.mxu0 0.0
    %106 = vmatprep.subr.mxu0 0.0
    %107 = vmatpush1.msra.mxu0 0.0
    %108 = vmatprep.subr.mxu0 0.0
    %109 = vmatpush1.msra.mxu0 0.0
    %110 = vmatprep.subr.mxu0 0.0
    %111 = vmatpush1.msra.mxu0 0.0
    %112 = vmatprep.subr.mxu0 0.0
    %113 = vmatpush1.msra.mxu0 0.0
    %114 = vmatprep.subr.mxu0 0.0
    %115 = vmatpush1.msra.mxu0 0.0
    %116 = vmatprep.subr.mxu0 0.0
    %117 = vmatpush1.msra.mxu0 0.0
    %118 = vmatprep.subr.mxu0 0.0
    %119 = vmatpush1.msra.mxu0 0.0
    %120 = vmatprep.subr.mxu0 0.0
    %121 = vmatpush1.msra.mxu0 0.0
    %122 = vmatprep.subr.mxu0 0.0
    %123 = vmatpush1.msra.mxu0 0.0
    %124 = vmatprep.subr.mxu0 0.0
    %125 = vmatpush1.msra.mxu0 0.0
    %126 = vmatprep.subr.mxu0 0.0
    %127 = vmatpush1.msra.mxu0 0.0
    %128 = vmatprep.subr.mxu0 0.0
    %129 = vmatpush1.msra.mxu0 0.0
    %130 = vmatprep.subr.mxu0 0.0
    %131 = vmatpush1.msra.mxu0 0.0
    %132 = vmatprep.subr.mxu0 0.0
    %133 = vmatpush1.msra.mxu0 0.0
    %134 = vmatprep.subr.mxu0 0.0
    %135 = vmatpush1.msra.mxu0 0.0
    %136 = vmatprep.subr.mxu0 0.0
    %137 = vmatpush1.msra.mxu0 0.0
    %138 = vmatprep.subr.mxu0 0.0
    %139 = vmatpush1.msra.mxu0 0.0
    %140 = vmatprep.subr.mxu0 0.0
    %141 = vmatpush1.msra.mxu0 0.0
    %142 = vmatprep.subr.mxu0 0.0
    %143 = vmatpush1.msra.mxu0 0.0
    %144 = vmatprep.mubr.f32.mxu0 0.0
    %145 = vmatmul.mubr.f32.gmra.mrb[0].mxu0 %v75
    %v146 = vpop.f32.mrb[0].mxu0
    %v147 = vadd.f32 %v72, %v146
    %v148 = vpop.f32.mrb[0].mxu0
    %149 = vmatprep.mubr.f32.mxu0 0.0
    %150 = vmatmul.mubr.f32.gmra.mrb[0].mxu0 %v78
    %v151 = vpop.f32.mrb[0].mxu0
    %v152 = vadd.f32 %v72, %v151
    %v153 = vpop.f32.mrb[0].mxu0
    %154 = vdwg.mxu0
    %156 = vrot.lane.b32.xlu0 %v72, 96
    %v157 = vpop.permute.xlu0 %156
    %159 = vmatprep.subr.mxu0 0.0
    %160 = vmatpush1.msra.mxu0 %v61
    %161 = vmatprep.subr.mxu0 0.0
    %162 = vmatpush1.msra.mxu0 %v62
    %163 = vmatprep.subr.mxu0 0.0
    %164 = vmatpush1.msra.mxu0 %v63
    %165 = vmatprep.subr.mxu0 0.0
    %166 = vmatpush1.msra.mxu0 %v64
    %167 = vmatprep.subr.mxu0 0.0
    %168 = vmatpush1.msra.mxu0 0.0
    %169 = vmatprep.subr.mxu0 0.0
    %170 = vmatpush1.msra.mxu0 0.0
    %171 = vmatprep.subr.mxu0 0.0
    %172 = vmatpush1.msra.mxu0 0.0
    %173 = vmatprep.subr.mxu0 0.0
    %174 = vmatpush1.msra.mxu0 0.0
    %175 = vmatprep.subr.mxu0 0.0
    %176 = vmatpush1.msra.mxu0 0.0
    %177 = vmatprep.subr.mxu0 0.0
    %178 = vmatpush1.msra.mxu0 0.0
    %179 = vmatprep.subr.mxu0 0.0
    %180 = vmatpush1.msra.mxu0 0.0
    %181 = vmatprep.subr.mxu0 0.0
    %182 = vmatpush1.msra.mxu0 0.0
    %183 = vmatprep.subr.mxu0 0.0
    %184 = vmatpush1.msra.mxu0 0.0
    %185 = vmatprep.subr.mxu0 0.0
    %186 = vmatpush1.msra.mxu0 0.0
    %187 = vmatprep.subr.mxu0 0.0
    %188 = vmatpush1.msra.mxu0 0.0
    %189 = vmatprep.subr.mxu0 0.0
    %190 = vmatpush1.msra.mxu0 0.0
    %191 = vmatprep.subr.mxu0 0.0
    %192 = vmatpush1.msra.mxu0 0.0
    %193 = vmatprep.subr.mxu0 0.0
    %194 = vmatpush1.msra.mxu0 0.0
    %195 = vmatprep.subr.mxu0 0.0
    %196 = vmatpush1.msra.mxu0 0.0
    %197 = vmatprep.subr.mxu0 0.0
    %198 = vmatpush1.msra.mxu0 0.0
    %199 = vmatprep.subr.mxu0 0.0
    %200 = vmatpush1.msra.mxu0 0.0
    %201 = vmatprep.subr.mxu0 0.0
    %202 = vmatpush1.msra.mxu0 0.0
    %203 = vmatprep.subr.mxu0 0.0
    %204 = vmatpush1.msra.mxu0 0.0
    %205 = vmatprep.subr.mxu0 0.0
    %206 = vmatpush1.msra.mxu0 0.0
    %207 = vmatprep.subr.mxu0 0.0
    %208 = vmatpush1.msra.mxu0 0.0
    %209 = vmatprep.subr.mxu0 0.0
    %210 = vmatpush1.msra.mxu0 0.0
    %211 = vmatprep.subr.mxu0 0.0
    %212 = vmatpush1.msra.mxu0 0.0
    %213 = vmatprep.subr.mxu0 0.0
    %214 = vmatpush1.msra.mxu0 0.0
    %215 = vmatprep.subr.mxu0 0.0
    %216 = vmatpush1.msra.mxu0 0.0
    %217 = vmatprep.subr.mxu0 0.0
    %218 = vmatpush1.msra.mxu0 0.0
    %219 = vmatprep.subr.mxu0 0.0
    %220 = vmatpush1.msra.mxu0 0.0
    %221 = vmatprep.subr.mxu0 0.0
    %222 = vmatpush1.msra.mxu0 0.0
    %223 = vmatprep.mubr.f32.mxu0 0.0
    %224 = vmatmul.mubr.f32.gmra.mrb[0].mxu0 %v75
    %v225 = vpop.f32.mrb[0].mxu0
    %v226 = vadd.f32 %v157, %v225
    %v227 = vpop.f32.mrb[0].mxu0
    %228 = vmatprep.mubr.f32.mxu0 0.0
    %229 = vmatmul.mubr.f32.gmra.mrb[0].mxu0 %v78
    %v230 = vpop.f32.mrb[0].mxu0
    %v231 = vadd.f32 %v157, %v230
    %v232 = vpop.f32.mrb[0].mxu0
    %233 = vdwg.mxu0
    %234 = vmatprep.subr.mxu0 0.0
    %235 = vmatpush1.msra.mxu0 %v65
    %236 = vmatprep.subr.mxu0 0.0
    %237 = vmatpush1.msra.mxu0 %v66
    %238 = vmatprep.subr.mxu0 0.0
    %239 = vmatpush1.msra.mxu0 %v67
    %240 = vmatprep.subr.mxu0 0.0
    %241 = vmatpush1.msra.mxu0 %v68
    %242 = vmatprep.subr.mxu0 0.0
    %243 = vmatpush1.msra.mxu0 0.0
    %244 = vmatprep.subr.mxu0 0.0
    %245 = vmatpush1.msra.mxu0 0.0
    %246 = vmatprep.subr.mxu0 0.0
    %247 = vmatpush1.msra.mxu0 0.0
    %248 = vmatprep.subr.mxu0 0.0
    %249 = vmatpush1.msra.mxu0 0.0
    %250 = vmatprep.subr.mxu0 0.0
    %251 = vmatpush1.msra.mxu0 0.0
    %252 = vmatprep.subr.mxu0 0.0
    %253 = vmatpush1.msra.mxu0 0.0
    %254 = vmatprep.subr.mxu0 0.0
    %255 = vmatpush1.msra.mxu0 0.0
    %256 = vmatprep.subr.mxu0 0.0
    %257 = vmatpush1.msra.mxu0 0.0
    %258 = vmatprep.subr.mxu0 0.0
    %259 = vmatpush1.msra.mxu0 0.0
    %260 = vmatprep.subr.mxu0 0.0
    %261 = vmatpush1.msra.mxu0 0.0
    %262 = vmatprep.subr.mxu0 0.0
    %263 = vmatpush1.msra.mxu0 0.0
    %264 = vmatprep.subr.mxu0 0.0
    %265 = vmatpush1.msra.mxu0 0.0
    %266 = vmatprep.subr.mxu0 0.0
    %267 = vmatpush1.msra.mxu0 0.0
    %268 = vmatprep.subr.mxu0 0.0
    %269 = vmatpush1.msra.mxu0 0.0
    %270 = vmatprep.subr.mxu0 0.0
    %271 = vmatpush1.msra.mxu0 0.0
    %272 = vmatprep.subr.mxu0 0.0
    %273 = vmatpush1.msra.mxu0 0.0
    %274 = vmatprep.subr.mxu0 0.0
    %275 = vmatpush1.msra.mxu0 0.0
    %276 = vmatprep.subr.mxu0 0.0
    %277 = vmatpush1.msra.mxu0 0.0
    %278 = vmatprep.subr.mxu0 0.0
    %279 = vmatpush1.msra.mxu0 0.0
    %280 = vmatprep.subr.mxu0 0.0
    %281 = vmatpush1.msra.mxu0 0.0
    %282 = vmatprep.subr.mxu0 0.0
    %283 = vmatpush1.msra.mxu0 0.0
    %284 = vmatprep.subr.mxu0 0.0
    %285 = vmatpush1.msra.mxu0 0.0
    %286 = vmatprep.subr.mxu0 0.0
    %287 = vmatpush1.msra.mxu0 0.0
    %288 = vmatprep.subr.mxu0 0.0
    %289 = vmatpush1.msra.mxu0 0.0
    %290 = vmatprep.subr.mxu0 0.0
    %291 = vmatpush1.msra.mxu0 0.0
    %292 = vmatprep.subr.mxu0 0.0
    %293 = vmatpush1.msra.mxu0 0.0
    %294 = vmatprep.subr.mxu0 0.0
    %295 = vmatpush1.msra.mxu0 0.0
    %296 = vmatprep.subr.mxu0 0.0
    %297 = vmatpush1.msra.mxu0 0.0
    %298 = vmatprep.mubr.f32.mxu0 0.0
    %299 = vmatmul.mubr.f32.gmra.mrb[0].mxu0 %v75
    %v300 = vpop.f32.mrb[0].mxu0
    %v301 = vadd.f32 0.0, %v300
    %v302 = vpop.f32.mrb[0].mxu0
    %303 = vmatprep.mubr.f32.mxu0 0.0
    %304 = vmatmul.mubr.f32.gmra.mrb[0].mxu0 %v78
    %v305 = vpop.f32.mrb[0].mxu0
    %v306 = vadd.f32 0.0, %v305
    %v307 = vpop.f32.mrb[0].mxu0
    %308 = vdwg.mxu0
    %vm309 = vcmask 64512
    %v311 = vsel %vm309, %v147, 0
    %v314 = vsel %vm309, %v152, 0
    %v317 = vsel %vm309, %v226, 0
    %v320 = vsel %vm309, %v231, 0
    %322 = vmatprep.subr.mxu0 0.0
    %323 = vmatpush1.xpose.msra.mxu0 %v317
    %324 = vmatprep.subr.mxu0 0.0
    %325 = vmatpush1.xpose.msra.mxu0 %v320
    %326 = vmatprep.subr.mxu0 0.0
    %327 = vmatpush1.xpose.msra.mxu0 0.0
    %328 = vmatprep.subr.mxu0 0.0
    %329 = vmatpush1.xpose.msra.mxu0 0.0
    %330 = vmatprep.subr.mxu0 0.0
    %331 = vmatpush1.xpose.msra.mxu0 0.0
    %332 = vmatprep.subr.mxu0 0.0
    %333 = vmatpush1.xpose.msra.mxu0 0.0
    %334 = vmatprep.subr.mxu0 0.0
    %335 = vmatpush1.xpose.msra.mxu0 0.0
    %336 = vmatprep.subr.mxu0 0.0
    %337 = vmatpush1.xpose.msra.mxu0 0.0
    %338 = vmatprep.subr.mxu0 0.0
    %339 = vmatpush1.xpose.msra.mxu0 0.0
    %340 = vmatprep.subr.mxu0 0.0
    %341 = vmatpush1.xpose.msra.mxu0 0.0
    %342 = vmatprep.subr.mxu0 0.0
    %343 = vmatpush1.xpose.msra.mxu0 0.0
    %344 = vmatprep.subr.mxu0 0.0
    %345 = vmatpush1.xpose.msra.mxu0 0.0
    %346 = vmatprep.subr.mxu0 0.0
    %347 = vmatpush1.xpose.msra.mxu0 0.0
    %348 = vmatprep.subr.mxu0 0.0
    %349 = vmatpush1.xpose.msra.mxu0 0.0
    %350 = vmatprep.subr.mxu0 0.0
    %351 = vmatpush1.xpose.msra.mxu0 0.0
    %352 = vmatprep.subr.mxu0 0.0
    %353 = vmatpush1.xpose.msra.mxu0 0.0
    %354 = vmatprep.subr.mxu0 0.0
    %355 = vmatpush1.xpose.msra.mxu0 0.0
    %356 = vmatprep.subr.mxu0 0.0
    %357 = vmatpush1.xpose.msra.mxu0 0.0
    %358 = vmatprep.subr.mxu0 0.0
    %359 = vmatpush1.xpose.msra.mxu0 0.0
    %360 = vmatprep.subr.mxu0 0.0
    %361 = vmatpush1.xpose.msra.mxu0 0.0
    %362 = vmatprep.subr.mxu0 0.0
    %363 = vmatpush1.xpose.msra.mxu0 0.0
    %364 = vmatprep.subr.mxu0 0.0
    %365 = vmatpush1.xpose.msra.mxu0 0.0
    %366 = vmatprep.subr.mxu0 0.0
    %367 = vmatpush1.xpose.msra.mxu0 0.0
    %368 = vmatprep.subr.mxu0 0.0
    %369 = vmatpush1.xpose.msra.mxu0 0.0
    %370 = vmatprep.subr.mxu0 0.0
    %371 = vmatpush1.xpose.msra.mxu0 0.0
    %372 = vmatprep.subr.mxu0 0.0
    %373 = vmatpush1.xpose.msra.mxu0 0.0
    %374 = vmatprep.subr.mxu0 0.0
    %375 = vmatpush1.xpose.msra.mxu0 0.0
    %376 = vmatprep.subr.mxu0 0.0
    %377 = vmatpush1.xpose.msra.mxu0 0.0
    %378 = vmatprep.subr.mxu0 0.0
    %379 = vmatpush1.xpose.msra.mxu0 0.0
    %380 = vmatprep.subr.mxu0 0.0
    %381 = vmatpush1.xpose.msra.mxu0 0.0
    %382 = vmatprep.subr.mxu0 0.0
    %383 = vmatpush1.xpose.msra.mxu0 0.0
    %384 = vmatprep.subr.mxu0 0.0
    %385 = vmatpush1.xpose.msra.mxu0 0.0
    %386 = vmatprep.mubr.f32.mxu0 0.0
    %387 = vmatmul.mubr.f32.gmra.mrb[0].mxu0 %v311
    %v388 = vpop.f32.mrb[0].mxu0
    %v389 = vadd.f32 0.0, %v388
    %v390 = vpop.f32.mrb[0].mxu0
    %391 = vmatprep.mubr.f32.mxu0 0.0
    %392 = vmatmul.mubr.f32.gmra.mrb[0].mxu0 %v314
    %v393 = vpop.f32.mrb[0].mxu0
    %v394 = vadd.f32 0.0, %v393
    %v395 = vpop.f32.mrb[0].mxu0
    %396 = vdwg.mxu0
    %v397 = vmul.f32 %v389, 0.35355338
    %v398 = vmul.f32 %v394, 0.35355338
    %v399 = vadd.f32 %v397, %v52
    %v400 = vadd.f32 %v398, %v53
    %vm401 = vcmask 130048
    %v402 = vsel %vm401, %v399, -inf
    %403 = vmax.xlane.f32.xlu0 %v402
    %v404 = vpop.xlane.xlu0 %403
    %v405 = vsel %vm401, %v400, -inf
    %406 = vmax.xlane.f32.xlu0 %v405
    %v407 = vpop.xlane.xlu0 %406
    %v408 = vsub.f32 %v399, %v404
    %v409 = vsub.f32 %v400, %v407
    %v410 = vmul.f32 %v408, 1.442695
    %v411 = vpow.pop %v410
    %v412 = vmul.f32 %v409, 1.442695
    %v413 = vpow.pop %v412
    %v414 = vsel %vm401, %v411, 0.0
    %415 = vadd.xlane.f32.xlu0 %v414
    %v416 = vpop.xlane.xlu0 %415
    %v417 = vsel %vm401, %v413, 0.0
    %418 = vadd.xlane.f32.xlu0 %v417
    %v419 = vpop.xlane.xlu0 %418
    %v420 = vrcp.pop %v416
    %v421 = vrcp.pop %v419
    %v422 = vmul.f32 %v411, %v420
    %v423 = vmul.f32 %v413, %v421
    %424 = vrot.lane.b32.xlu0 %v147, 120
    %v425 = vpop.permute.xlu0 %424
    %426 = vrot.lane.b32.xlu0 %v152, 120
    %v427 = vpop.permute.xlu0 %426
    %428 = vrot.lane.b32.xlu0 %v226, 120
    %v429 = vpop.permute.xlu0 %428
    %430 = vrot.lane.b32.xlu0 %v231, 120
    %v431 = vpop.permute.xlu0 %430
    %v432 = vsel %vm309, %v425, 0
    %v434 = vsel %vm309, %v427, 0
    %v436 = vsel %vm309, %v429, 0
    %v438 = vsel %vm309, %v431, 0
    %440 = vmatprep.subr.mxu0 0.0
    %441 = vmatpush1.xpose.msra.mxu0 %v436
    %442 = vmatprep.subr.mxu0 0.0
    %443 = vmatpush1.xpose.msra.mxu0 %v438
    %444 = vmatprep.subr.mxu0 0.0
    %445 = vmatpush1.xpose.msra.mxu0 0.0
    %446 = vmatprep.subr.mxu0 0.0
    %447 = vmatpush1.xpose.msra.mxu0 0.0
    %448 = vmatprep.subr.mxu0 0.0
    %449 = vmatpush1.xpose.msra.mxu0 0.0
    %450 = vmatprep.subr.mxu0 0.0
    %451 = vmatpush1.xpose.msra.mxu0 0.0
    %452 = vmatprep.subr.mxu0 0.0
    %453 = vmatpush1.xpose.msra.mxu0 0.0
    %454 = vmatprep.subr.mxu0 0.0
    %455 = vmatpush1.xpose.msra.mxu0 0.0
    %456 = vmatprep.subr.mxu0 0.0
    %457 = vmatpush1.xpose.msra.mxu0 0.0
    %458 = vmatprep.subr.mxu0 0.0
    %459 = vmatpush1.xpose.msra.mxu0 0.0
    %460 = vmatprep.subr.mxu0 0.0
    %461 = vmatpush1.xpose.msra.mxu0 0.0
    %462 = vmatprep.subr.mxu0 0.0
    %463 = vmatpush1.xpose.msra.mxu0 0.0
    %464 = vmatprep.subr.mxu0 0.0
    %465 = vmatpush1.xpose.msra.mxu0 0.0
    %466 = vmatprep.subr.mxu0 0.0
    %467 = vmatpush1.xpose.msra.mxu0 0.0
    %468 = vmatprep.subr.mxu0 0.0
    %469 = vmatpush1.xpose.msra.mxu0 0.0
    %470 = vmatprep.subr.mxu0 0.0
    %471 = vmatpush1.xpose.msra.mxu0 0.0
    %472 = vmatprep.subr.mxu0 0.0
    %473 = vmatpush1.xpose.msra.mxu0 0.0
    %474 = vmatprep.subr.mxu0 0.0
    %475 = vmatpush1.xpose.msra.mxu0 0.0
    %476 = vmatprep.subr.mxu0 0.0
    %477 = vmatpush1.xpose.msra.mxu0 0.0
    %478 = vmatprep.subr.mxu0 0.0
    %479 = vmatpush1.xpose.msra.mxu0 0.0
    %480 = vmatprep.subr.mxu0 0.0
    %481 = vmatpush1.xpose.msra.mxu0 0.0
    %482 = vmatprep.subr.mxu0 0.0
    %483 = vmatpush1.xpose.msra.mxu0 0.0
    %484 = vmatprep.subr.mxu0 0.0
    %485 = vmatpush1.xpose.msra.mxu0 0.0
    %486 = vmatprep.subr.mxu0 0.0
    %487 = vmatpush1.xpose.msra.mxu0 0.0
    %488 = vmatprep.subr.mxu0 0.0
    %489 = vmatpush1.xpose.msra.mxu0 0.0
    %490 = vmatprep.subr.mxu0 0.0
    %491 = vmatpush1.xpose.msra.mxu0 0.0
    %492 = vmatprep.subr.mxu0 0.0
    %493 = vmatpush1.xpose.msra.mxu0 0.0
    %494 = vmatprep.subr.mxu0 0.0
    %495 = vmatpush1.xpose.msra.mxu0 0.0
    %496 = vmatprep.subr.mxu0 0.0
    %497 = vmatpush1.xpose.msra.mxu0 0.0
    %498 = vmatprep.subr.mxu0 0.0
    %499 = vmatpush1.xpose.msra.mxu0 0.0
    %500 = vmatprep.subr.mxu0 0.0
    %501 = vmatpush1.xpose.msra.mxu0 0.0
    %502 = vmatprep.subr.mxu0 0.0
    %503 = vmatpush1.xpose.msra.mxu0 0.0
    %504 = vmatprep.mubr.f32.mxu0 0.0
    %505 = vmatmul.mubr.f32.gmra.mrb[0].mxu0 %v432
    %v506 = vpop.f32.mrb[0].mxu0
    %v507 = vadd.f32 0.0, %v506
    %v508 = vpop.f32.mrb[0].mxu0
    %509 = vmatprep.mubr.f32.mxu0 0.0
    %510 = vmatmul.mubr.f32.gmra.mrb[0].mxu0 %v434
    %v511 = vpop.f32.mrb[0].mxu0
    %v512 = vadd.f32 0.0, %v511
    %v513 = vpop.f32.mrb[0].mxu0
    %514 = vdwg.mxu0
    %v515 = vmul.f32 %v507, 0.35355338
    %v516 = vmul.f32 %v512, 0.35355338
    %v517 = vadd.f32 %v515, %v52
    %v518 = vadd.f32 %v516, %v53
    %v519 = vsel %vm401, %v517, -inf
    %520 = vmax.xlane.f32.xlu0 %v519
    %v521 = vpop.xlane.xlu0 %520
    %v522 = vsel %vm401, %v518, -inf
    %523 = vmax.xlane.f32.xlu0 %v522
    %v524 = vpop.xlane.xlu0 %523
    %v525 = vsub.f32 %v517, %v521
    %v526 = vsub.f32 %v518, %v524
    %v527 = vmul.f32 %v525, 1.442695
    %v528 = vpow.pop %v527
    %v529 = vmul.f32 %v526, 1.442695
    %v530 = vpow.pop %v529
    %v531 = vsel %vm401, %v528, 0.0
    %532 = vadd.xlane.f32.xlu0 %v531
    %v533 = vpop.xlane.xlu0 %532
    %v534 = vsel %vm401, %v530, 0.0
    %535 = vadd.xlane.f32.xlu0 %v534
    %v536 = vpop.xlane.xlu0 %535
    %v537 = vrcp.pop %v533
    %v538 = vrcp.pop %v536
    %v539 = vmul.f32 %v528, %v537
    %v540 = vmul.f32 %v530, %v538
    %541 = vrot.lane.b32.xlu0 %v147, 112
    %v542 = vpop.permute.xlu0 %541
    %543 = vrot.lane.b32.xlu0 %v152, 112
    %v544 = vpop.permute.xlu0 %543
    %545 = vrot.lane.b32.xlu0 %v226, 112
    %v546 = vpop.permute.xlu0 %545
    %547 = vrot.lane.b32.xlu0 %v231, 112
    %v548 = vpop.permute.xlu0 %547
    %v549 = vsel %vm309, %v542, 0
    %v551 = vsel %vm309, %v544, 0
    %v553 = vsel %vm309, %v546, 0
    %v555 = vsel %vm309, %v548, 0
    %557 = vmatprep.subr.mxu0 0.0
    %558 = vmatpush1.xpose.msra.mxu0 %v553
    %559 = vmatprep.subr.mxu0 0.0
    %560 = vmatpush1.xpose.msra.mxu0 %v555
    %561 = vmatprep.subr.mxu0 0.0
    %562 = vmatpush1.xpose.msra.mxu0 0.0
    %563 = vmatprep.subr.mxu0 0.0
    %564 = vmatpush1.xpose.msra.mxu0 0.0
    %565 = vmatprep.subr.mxu0 0.0
    %566 = vmatpush1.xpose.msra.mxu0 0.0
    %567 = vmatprep.subr.mxu0 0.0
    %568 = vmatpush1.xpose.msra.mxu0 0.0
    %569 = vmatprep.subr.mxu0 0.0
    %570 = vmatpush1.xpose.msra.mxu0 0.0
    %571 = vmatprep.subr.mxu0 0.0
    %572 = vmatpush1.xpose.msra.mxu0 0.0
    %573 = vmatprep.subr.mxu0 0.0
    %574 = vmatpush1.xpose.msra.mxu0 0.0
    %575 = vmatprep.subr.mxu0 0.0
    %576 = vmatpush1.xpose.msra.mxu0 0.0
    %577 = vmatprep.subr.mxu0 0.0
    %578 = vmatpush1.xpose.msra.mxu0 0.0
    %579 = vmatprep.subr.mxu0 0.0
    %580 = vmatpush1.xpose.msra.mxu0 0.0
    %581 = vmatprep.subr.mxu0 0.0
    %582 = vmatpush1.xpose.msra.mxu0 0.0
    %583 = vmatprep.subr.mxu0 0.0
    %584 = vmatpush1.xpose.msra.mxu0 0.0
    %585 = vmatprep.subr.mxu0 0.0
    %586 = vmatpush1.xpose.msra.mxu0 0.0
    %587 = vmatprep.subr.mxu0 0.0
    %588 = vmatpush1.xpose.msra.mxu0 0.0
    %589 = vmatprep.subr.mxu0 0.0
    %590 = vmatpush1.xpose.msra.mxu0 0.0
    %591 = vmatprep.subr.mxu0 0.0
    %592 = vmatpush1.xpose.msra.mxu0 0.0
    %593 = vmatprep.subr.mxu0 0.0
    %594 = vmatpush1.xpose.msra.mxu0 0.0
    %595 = vmatprep.subr.mxu0 0.0
    %596 = vmatpush1.xpose.msra.mxu0 0.0
    %597 = vmatprep.subr.mxu0 0.0
    %598 = vmatpush1.xpose.msra.mxu0 0.0
    %599 = vmatprep.subr.mxu0 0.0
    %600 = vmatpush1.xpose.msra.mxu0 0.0
    %601 = vmatprep.subr.mxu0 0.0
    %602 = vmatpush1.xpose.msra.mxu0 0.0
    %603 = vmatprep.subr.mxu0 0.0
    %604 = vmatpush1.xpose.msra.mxu0 0.0
    %605 = vmatprep.subr.mxu0 0.0
    %606 = vmatpush1.xpose.msra.mxu0 0.0
    %607 = vmatprep.subr.mxu0 0.0
    %608 = vmatpush1.xpose.msra.mxu0 0.0
    %609 = vmatprep.subr.mxu0 0.0
    %610 = vmatpush1.xpose.msra.mxu0 0.0
    %611 = vmatprep.subr.mxu0 0.0
    %612 = vmatpush1.xpose.msra.mxu0 0.0
    %613 = vmatprep.subr.mxu0 0.0
    %614 = vmatpush1.xpose.msra.mxu0 0.0
    %615 = vmatprep.subr.mxu0 0.0
    %616 = vmatpush1.xpose.msra.mxu0 0.0
    %617 = vmatprep.subr.mxu0 0.0
    %618 = vmatpush1.xpose.msra.mxu0 0.0
    %619 = vmatprep.subr.mxu0 0.0
    %620 = vmatpush1.xpose.msra.mxu0 0.0
    %621 = vmatprep.mubr.f32.mxu0 0.0
    %622 = vmatmul.mubr.f32.gmra.mrb[0].mxu0 %v549
    %v623 = vpop.f32.mrb[0].mxu0
    %v624 = vadd.f32 0.0, %v623
    %v625 = vpop.f32.mrb[0].mxu0
    %626 = vmatprep.mubr.f32.mxu0 0.0
    %627 = vmatmul.mubr.f32.gmra.mrb[0].mxu0 %v551
    %v628 = vpop.f32.mrb[0].mxu0
    %v629 = vadd.f32 0.0, %v628
    %v630 = vpop.f32.mrb[0].mxu0
    %631 = vdwg.mxu0
    %v632 = vmul.f32 %v624, 0.35355338
    %v633 = vmul.f32 %v629, 0.35355338
    %v634 = vadd.f32 %v632, %v52
    %v635 = vadd.f32 %v633, %v53
    %v636 = vsel %vm401, %v634, -inf
    %637 = vmax.xlane.f32.xlu0 %v636
    %v638 = vpop.xlane.xlu0 %637
    %v639 = vsel %vm401, %v635, -inf
    %640 = vmax.xlane.f32.xlu0 %v639
    %v641 = vpop.xlane.xlu0 %640
    %v642 = vsub.f32 %v634, %v638
    %v643 = vsub.f32 %v635, %v641
    %v644 = vmul.f32 %v642, 1.442695
    %v645 = vpow.pop %v644
    %v646 = vmul.f32 %v643, 1.442695
    %v647 = vpow.pop %v646
    %v648 = vsel %vm401, %v645, 0.0
    %649 = vadd.xlane.f32.xlu0 %v648
    %v650 = vpop.xlane.xlu0 %649
    %v651 = vsel %vm401, %v647, 0.0
    %652 = vadd.xlane.f32.xlu0 %v651
    %v653 = vpop.xlane.xlu0 %652
    %v654 = vrcp.pop %v650
    %v655 = vrcp.pop %v653
    %v656 = vmul.f32 %v645, %v654
    %v657 = vmul.f32 %v647, %v655
    %658 = vrot.lane.b32.xlu0 %v147, 104
    %v659 = vpop.permute.xlu0 %658
    %660 = vrot.lane.b32.xlu0 %v152, 104
    %v661 = vpop.permute.xlu0 %660
    %662 = vrot.lane.b32.xlu0 %v226, 104
    %v663 = vpop.permute.xlu0 %662
    %664 = vrot.lane.b32.xlu0 %v231, 104
    %v665 = vpop.permute.xlu0 %664
    %v666 = vsel %vm309, %v659, 0
    %v668 = vsel %vm309, %v661, 0
    %v670 = vsel %vm309, %v663, 0
    %v672 = vsel %vm309, %v665, 0
    %674 = vmatprep.subr.mxu0 0.0
    %675 = vmatpush1.xpose.msra.mxu0 %v670
    %676 = vmatprep.subr.mxu0 0.0
    %677 = vmatpush1.xpose.msra.mxu0 %v672
    %678 = vmatprep.subr.mxu0 0.0
    %679 = vmatpush1.xpose.msra.mxu0 0.0
    %680 = vmatprep.subr.mxu0 0.0
    %681 = vmatpush1.xpose.msra.mxu0 0.0
    %682 = vmatprep.subr.mxu0 0.0
    %683 = vmatpush1.xpose.msra.mxu0 0.0
    %684 = vmatprep.subr.mxu0 0.0
    %685 = vmatpush1.xpose.msra.mxu0 0.0
    %686 = vmatprep.subr.mxu0 0.0
    %687 = vmatpush1.xpose.msra.mxu0 0.0
    %688 = vmatprep.subr.mxu0 0.0
    %689 = vmatpush1.xpose.msra.mxu0 0.0
    %690 = vmatprep.subr.mxu0 0.0
    %691 = vmatpush1.xpose.msra.mxu0 0.0
    %692 = vmatprep.subr.mxu0 0.0
    %693 = vmatpush1.xpose.msra.mxu0 0.0
    %694 = vmatprep.subr.mxu0 0.0
    %695 = vmatpush1.xpose.msra.mxu0 0.0
    %696 = vmatprep.subr.mxu0 0.0
    %697 = vmatpush1.xpose.msra.mxu0 0.0
    %698 = vmatprep.subr.mxu0 0.0
    %699 = vmatpush1.xpose.msra.mxu0 0.0
    %700 = vmatprep.subr.mxu0 0.0
    %701 = vmatpush1.xpose.msra.mxu0 0.0
    %702 = vmatprep.subr.mxu0 0.0
    %703 = vmatpush1.xpose.msra.mxu0 0.0
    %704 = vmatprep.subr.mxu0 0.0
    %705 = vmatpush1.xpose.msra.mxu0 0.0
    %706 = vmatprep.subr.mxu0 0.0
    %707 = vmatpush1.xpose.msra.mxu0 0.0
    %708 = vmatprep.subr.mxu0 0.0
    %709 = vmatpush1.xpose.msra.mxu0 0.0
    %710 = vmatprep.subr.mxu0 0.0
    %711 = vmatpush1.xpose.msra.mxu0 0.0
    %712 = vmatprep.subr.mxu0 0.0
    %713 = vmatpush1.xpose.msra.mxu0 0.0
    %714 = vmatprep.subr.mxu0 0.0
    %715 = vmatpush1.xpose.msra.mxu0 0.0
    %716 = vmatprep.subr.mxu0 0.0
    %717 = vmatpush1.xpose.msra.mxu0 0.0
    %718 = vmatprep.subr.mxu0 0.0
    %719 = vmatpush1.xpose.msra.mxu0 0.0
    %720 = vmatprep.subr.mxu0 0.0
    %721 = vmatpush1.xpose.msra.mxu0 0.0
    %722 = vmatprep.subr.mxu0 0.0
    %723 = vmatpush1.xpose.msra.mxu0 0.0
    %724 = vmatprep.subr.mxu0 0.0
    %725 = vmatpush1.xpose.msra.mxu0 0.0
    %726 = vmatprep.subr.mxu0 0.0
    %727 = vmatpush1.xpose.msra.mxu0 0.0
    %728 = vmatprep.subr.mxu0 0.0
    %729 = vmatpush1.xpose.msra.mxu0 0.0
    %730 = vmatprep.subr.mxu0 0.0
    %731 = vmatpush1.xpose.msra.mxu0 0.0
    %732 = vmatprep.subr.mxu0 0.0
    %733 = vmatpush1.xpose.msra.mxu0 0.0
    %734 = vmatprep.subr.mxu0 0.0
    %735 = vmatpush1.xpose.msra.mxu0 0.0
    %736 = vmatprep.subr.mxu0 0.0
    %737 = vmatpush1.xpose.msra.mxu0 0.0
    %738 = vmatprep.mubr.f32.mxu0 0.0
    %739 = vmatmul.mubr.f32.gmra.mrb[0].mxu0 %v666
    %v740 = vpop.f32.mrb[0].mxu0
    %v741 = vadd.f32 0.0, %v740
    %v742 = vpop.f32.mrb[0].mxu0
    %743 = vmatprep.mubr.f32.mxu0 0.0
    %744 = vmatmul.mubr.f32.gmra.mrb[0].mxu0 %v668
    %v745 = vpop.f32.mrb[0].mxu0
    %v746 = vadd.f32 0.0, %v745
    %v747 = vpop.f32.mrb[0].mxu0
    %748 = vdwg.mxu0
    %v749 = vmul.f32 %v741, 0.35355338
    %v750 = vmul.f32 %v746, 0.35355338
    %v751 = vadd.f32 %v749, %v52
    %v752 = vadd.f32 %v750, %v53
    %v753 = vsel %vm401, %v751, -inf
    %754 = vmax.xlane.f32.xlu0 %v753
    %v755 = vpop.xlane.xlu0 %754
    %v756 = vsel %vm401, %v752, -inf
    %757 = vmax.xlane.f32.xlu0 %v756
    %v758 = vpop.xlane.xlu0 %757
    %v759 = vsub.f32 %v751, %v755
    %v760 = vsub.f32 %v752, %v758
    %v761 = vmul.f32 %v759, 1.442695
    %v762 = vpow.pop %v761
    %v763 = vmul.f32 %v760, 1.442695
    %v764 = vpow.pop %v763
    %v765 = vsel %vm401, %v762, 0.0
    %766 = vadd.xlane.f32.xlu0 %v765
    %v767 = vpop.xlane.xlu0 %766
    %v768 = vsel %vm401, %v764, 0.0
    %769 = vadd.xlane.f32.xlu0 %v768
    %v770 = vpop.xlane.xlu0 %769
    %v771 = vrcp.pop %v767
    %v772 = vrcp.pop %v770
    %v773 = vmul.f32 %v762, %v771
    %v774 = vmul.f32 %v764, %v772
    %777 = vrot.lane.b32.xlu0 %v539, 16
    %v778 = vpop.permute.xlu0 %777
    %779 = vrot.lane.b32.xlu0 %v540, 16
    %v780 = vpop.permute.xlu0 %779
    %785 = vrot.lane.b32.xlu0 %v656, 32
    %v786 = vpop.permute.xlu0 %785
    %787 = vrot.lane.b32.xlu0 %v657, 32
    %v788 = vpop.permute.xlu0 %787
    %793 = vrot.lane.b32.xlu0 %v773, 48
    %v794 = vpop.permute.xlu0 %793
    %795 = vrot.lane.b32.xlu0 %v774, 48
    %v796 = vpop.permute.xlu0 %795
    %v799 = vsel %vm401, %v422, %v778
    %v800 = vsel %vm401, %v423, %v780
    %v801 = vsel %vm73, %v799, %v786
    %v802 = vsel %vm73, %v800, %v788
    %vm803 = vcmask 392192
    %v804 = vsel %vm803, %v801, %v794
    %v805 = vsel %vm803, %v802, %v796
    %vm806 = vcmask 523264
    %807 = vst.msk [vmem:[%s8] sm:$0xff] %vm806, %v804
    %808 = vst.msk [vmem:[%s8 + $0x8] sm:$0xff] %vm806, %v805
    %811 = vrot.lane.b32.xlu0 %v301, 96
    %v812 = vpop.permute.xlu0 %811
    %813 = vrot.lane.b32.xlu0 %v306, 96
    %v814 = vpop.permute.xlu0 %813
    %817 = vrot.lane.b32.xlu0 %v301, 64
    %v818 = vpop.permute.xlu0 %817
    %819 = vrot.lane.b32.xlu0 %v306, 64
    %v820 = vpop.permute.xlu0 %819
    %823 = vrot.lane.b32.xlu0 %v301, 32
    %v824 = vpop.permute.xlu0 %823
    %825 = vrot.lane.b32.xlu0 %v306, 32
    %v826 = vpop.permute.xlu0 %825
    %v829 = vlaneseq
    %v830 = vshrl.u32 %v829, 7
    %v831 = vsub.s32 1, %v830
    %v832 = vrot.slane %v56, %v831
    %v834 = vsel %vm806, %v804, 0
    %v837 = vsel %vm806, %v805, 0
    %839 = vmatprep.subr.mxu0 0.0
    %840 = vmatpush1.msra.mxu0 %v301
    %841 = vmatprep.subr.mxu0 0.0
    %842 = vmatpush1.msra.mxu0 %v306
    %843 = vmatprep.subr.mxu0 0.0
    %844 = vmatpush1.msra.mxu0 %v812
    %845 = vmatprep.subr.mxu0 0.0
    %846 = vmatpush1.msra.mxu0 %v814
    %847 = vmatprep.subr.mxu0 0.0
    %848 = vmatpush1.msra.mxu0 %v818
    %849 = vmatprep.subr.mxu0 0.0
    %850 = vmatpush1.msra.mxu0 %v820
    %851 = vmatprep.subr.mxu0 0.0
    %852 = vmatpush1.msra.mxu0 %v824
    %853 = vmatprep.subr.mxu0 0.0
    %854 = vmatpush1.msra.mxu0 %v826
    %855 = vmatprep.subr.mxu0 0.0
    %856 = vmatpush1.msra.mxu0 0.0
    %857 = vmatprep.subr.mxu0 0.0
    %858 = vmatpush1.msra.mxu0 0.0
    %859 = vmatprep.subr.mxu0 0.0
    %860 = vmatpush1.msra.mxu0 0.0
    %861 = vmatprep.subr.mxu0 0.0
    %862 = vmatpush1.msra.mxu0 0.0
    %863 = vmatprep.subr.mxu0 0.0
    %864 = vmatpush1.msra.mxu0 0.0
    %865 = vmatprep.subr.mxu0 0.0
    %866 = vmatpush1.msra.mxu0 0.0
    %867 = vmatprep.subr.mxu0 0.0
    %868 = vmatpush1.msra.mxu0 0.0
    %869 = vmatprep.subr.mxu0 0.0
    %870 = vmatpush1.msra.mxu0 0.0
    %871 = vmatprep.subr.mxu0 0.0
    %872 = vmatpush1.msra.mxu0 0.0
    %873 = vmatprep.subr.mxu0 0.0
    %874 = vmatpush1.msra.mxu0 0.0
    %875 = vmatprep.subr.mxu0 0.0
    %876 = vmatpush1.msra.mxu0 0.0
    %877 = vmatprep.subr.mxu0 0.0
    %878 = vmatpush1.msra.mxu0 0.0
    %879 = vmatprep.subr.mxu0 0.0
    %880 = vmatpush1.msra.mxu0 0.0
    %881 = vmatprep.subr.mxu0 0.0
    %882 = vmatpush1.msra.mxu0 0.0
    %883 = vmatprep.subr.mxu0 0.0
    %884 = vmatpush1.msra.mxu0 0.0
    %885 = vmatprep.subr.mxu0 0.0
    %886 = vmatpush1.msra.mxu0 0.0
    %887 = vmatprep.subr.mxu0 0.0
    %888 = vmatpush1.msra.mxu0 0.0
    %889 = vmatprep.subr.mxu0 0.0
    %890 = vmatpush1.msra.mxu0 0.0
    %891 = vmatprep.subr.mxu0 0.0
    %892 = vmatpush1.msra.mxu0 0.0
    %893 = vmatprep.subr.mxu0 0.0
    %894 = vmatpush1.msra.mxu0 0.0
    %895 = vmatprep.subr.mxu0 0.0
    %896 = vmatpush1.msra.mxu0 0.0
    %897 = vmatprep.subr.mxu0 0.0
    %898 = vmatpush1.msra.mxu0 0.0
    %899 = vmatprep.subr.mxu0 0.0
    %900 = vmatpush1.msra.mxu0 0.0
    %901 = vmatprep.subr.mxu0 0.0
    %902 = vmatpush1.msra.mxu0 0.0
    %903 = vmatprep.mubr.f32.mxu0 0.0
    %904 = vmatmul.mubr.f32.gmra.mrb[0].mxu0 %v834
    %v905 = vpop.f32.mrb[0].mxu0
    %v906 = vadd.f32 %v832, %v905
    %v907 = vpop.f32.mrb[0].mxu0
    %908 = vmatprep.mubr.f32.mxu0 0.0
    %909 = vmatmul.mubr.f32.gmra.mrb[0].mxu0 %v837
    %v910 = vpop.f32.mrb[0].mxu0
    %v911 = vadd.f32 %v832, %v910
    %v912 = vpop.f32.mrb[0].mxu0
    %913 = vdwg.mxu0
    %v914 = vadd.f32 %v906, %v44
    %v915 = vadd.f32 %v911, %v45
    %v916 = vsel %vm73, %v914, 0.0
    %917 = vadd.xlane.f32.xlu0 %v916
    %v918 = vpop.xlane.xlu0 %917
    %v919 = vsel %vm73, %v915, 0.0
    %920 = vadd.xlane.f32.xlu0 %v919
    %v921 = vpop.xlane.xlu0 %920
    %v922 = vrcp.pop 32.0
    %v923 = vmul.f32 %v918, %v922
    %v924 = vmul.f32 %v921, %v922
    %v925 = vsub.f32 %v914, %v923
    %v926 = vsub.f32 %v915, %v924
    %v927 = vmul.f32 %v925, %v925
    %v928 = vmul.f32 %v926, %v926
    %v929 = vsel %vm73, %v927, 0.0
    %930 = vadd.xlane.f32.xlu0 %v929
    %v931 = vpop.xlane.xlu0 %930
    %v932 = vsel %vm73, %v928, 0.0
    %933 = vadd.xlane.f32.xlu0 %v932
    %v934 = vpop.xlane.xlu0 %933
    %v935 = vmul.f32 %v931, %v922
    %v936 = vmul.f32 %v934, %v922
    %v937 = vadd.f32 %v935, 1e-05
    %v938 = vadd.f32 %v936, 1e-05
    %v939 = vrsqrt.pop %v937
    %v940 = vrsqrt.pop %v938
    %v941 = vmul.f32 %v925, %v939
    %v942 = vmul.f32 %v926, %v940
    %944 = vrot.lane.b32.xlu0 %v832, 96
    %v945 = vpop.permute.xlu0 %944
    %v947 = vmul.f32 %v941, %v945
    %v948 = vmul.f32 %v942, %v945
    %949 = vrot.lane.b32.xlu0 %v832, 64
    %v950 = vpop.permute.xlu0 %949
    %v952 = vadd.f32 %v947, %v950
    %v953 = vadd.f32 %v948, %v950
    %955 = vset.pattern.permute.xlu0 0
    %956 = vperm.xlu0 %955, %v50
    %v957 = vpop.permute.xlu0 %956
    %960 = vset.pattern.permute.xlu0 0
    %961 = vperm.xlu0 %960, %v51
    %v962 = vpop.permute.xlu0 %961
    %v964 = vmul.f32 %v952, %v957
    %v965 = vmul.f32 %v953, %v962
    %v966 = vld [vmem:[%s5 + $0x60] sm:$0xff]
    %v967 = vld [vmem:[%s5 + $0x68] sm:$0xff]
    %v968 = vld [vmem:[%s5 + $0x70] sm:$0xff]
    %v969 = vld [vmem:[%s5 + $0x78] sm:$0xff]
    %v970 = vld [vmem:[%s5 + $0x80] sm:$0xff]
    %v971 = vld [vmem:[%s5 + $0x88] sm:$0xff]
    %v972 = vld [vmem:[%s5 + $0x90] sm:$0xff]
    %v973 = vld [vmem:[%s5 + $0x98] sm:$0xff]
    %v974 = vld [vmem:[%s5 + $0xa0] sm:$0xff]
    %v975 = vld [vmem:[%s5 + $0xa8] sm:$0xff]
    %v976 = vld [vmem:[%s5 + $0xb0] sm:$0xff]
    %v977 = vld [vmem:[%s5 + $0xb8] sm:$0xff]
    %978 = vrot.lane.b32.xlu0 %v72, 64
    %v979 = vpop.permute.xlu0 %978
    %v982 = vsel %vm73, %v964, 0
    %v985 = vsel %vm73, %v965, 0
    %987 = vmatprep.subr.mxu0 0.0
    %988 = vmatpush1.msra.mxu0 %v966
    %989 = vmatprep.subr.mxu0 0.0
    %990 = vmatpush1.msra.mxu0 %v967
    %991 = vmatprep.subr.mxu0 0.0
    %992 = vmatpush1.msra.mxu0 %v968
    %993 = vmatprep.subr.mxu0 0.0
    %994 = vmatpush1.msra.mxu0 %v969
    %995 = vmatprep.subr.mxu0 0.0
    %996 = vmatpush1.msra.mxu0 0.0
    %997 = vmatprep.subr.mxu0 0.0
    %998 = vmatpush1.msra.mxu0 0.0
    %999 = vmatprep.subr.mxu0 0.0
    %1000 = vmatpush1.msra.mxu0 0.0
    %1001 = vmatprep.subr.mxu0 0.0
    %1002 = vmatpush1.msra.mxu0 0.0
    %1003 = vmatprep.subr.mxu0 0.0
    %1004 = vmatpush1.msra.mxu0 0.0
    %1005 = vmatprep.subr.mxu0 0.0
    %1006 = vmatpush1.msra.mxu0 0.0
    %1007 = vmatprep.subr.mxu0 0.0
    %1008 = vmatpush1.msra.mxu0 0.0
    %1009 = vmatprep.subr.mxu0 0.0
    %1010 = vmatpush1.msra.mxu0 0.0
    %1011 = vmatprep.subr.mxu0 0.0
    %1012 = vmatpush1.msra.mxu0 0.0
    %1013 = vmatprep.subr.mxu0 0.0
    %1014 = vmatpush1.msra.mxu0 0.0
    %1015 = vmatprep.subr.mxu0 0.0
    %1016 = vmatpush1.msra.mxu0 0.0
    %1017 = vmatprep.subr.mxu0 0.0
    %1018 = vmatpush1.msra.mxu0 0.0
    %1019 = vmatprep.subr.mxu0 0.0
    %1020 = vmatpush1.msra.mxu0 0.0
    %1021 = vmatprep.subr.mxu0 0.0
    %1022 = vmatpush1.msra.mxu0 0.0
    %1023 = vmatprep.subr.mxu0 0.0
    %1024 = vmatpush1.msra.mxu0 0.0
    %1025 = vmatprep.subr.mxu0 0.0
    %1026 = vmatpush1.msra.mxu0 0.0
    %1027 = vmatprep.subr.mxu0 0.0
    %1028 = vmatpush1.msra.mxu0 0.0
    %1029 = vmatprep.subr.mxu0 0.0
    %1030 = vmatpush1.msra.mxu0 0.0
    %1031 = vmatprep.subr.mxu0 0.0
    %1032 = vmatpush1.msra.mxu0 0.0
    %1033 = vmatprep.subr.mxu0 0.0
    %1034 = vmatpush1.msra.mxu0 0.0
    %1035 = vmatprep.subr.mxu0 0.0
    %1036 = vmatpush1.msra.mxu0 0.0
    %1037 = vmatprep.subr.mxu0 0.0
    %1038 = vmatpush1.msra.mxu0 0.0
    %1039 = vmatprep.subr.mxu0 0.0
    %1040 = vmatpush1.msra.mxu0 0.0
    %1041 = vmatprep.subr.mxu0 0.0
    %1042 = vmatpush1.msra.mxu0 0.0
    %1043 = vmatprep.subr.mxu0 0.0
    %1044 = vmatpush1.msra.mxu0 0.0
    %1045 = vmatprep.subr.mxu0 0.0
    %1046 = vmatpush1.msra.mxu0 0.0
    %1047 = vmatprep.subr.mxu0 0.0
    %1048 = vmatpush1.msra.mxu0 0.0
    %1049 = vmatprep.subr.mxu0 0.0
    %1050 = vmatpush1.msra.mxu0 0.0
    %1051 = vmatprep.mubr.f32.mxu0 0.0
    %1052 = vmatmul.mubr.f32.gmra.mrb[0].mxu0 %v982
    %v1053 = vpop.f32.mrb[0].mxu0
    %v1054 = vadd.f32 %v979, %v1053
    %v1055 = vpop.f32.mrb[0].mxu0
    %1056 = vmatprep.mubr.f32.mxu0 0.0
    %1057 = vmatmul.mubr.f32.gmra.mrb[0].mxu0 %v985
    %v1058 = vpop.f32.mrb[0].mxu0
    %v1059 = vadd.f32 %v979, %v1058
    %v1060 = vpop.f32.mrb[0].mxu0
    %1061 = vdwg.mxu0
    %1062 = vrot.lane.b32.xlu0 %v72, 32
    %v1063 = vpop.permute.xlu0 %1062
    %v1066 = vsel %vm73, %v46, 0
    %v1069 = vsel %vm73, %v47, 0
    %v1072 = vsel %vm73, %v48, 0
    %v1075 = vsel %vm73, %v49, 0
    %1077 = vmatprep.subr.mxu0 0.0
    %1078 = vmatpush1.msra.mxu0 %v970
    %1079 = vmatprep.subr.mxu0 0.0
    %1080 = vmatpush1.msra.mxu0 %v971
    %1081 = vmatprep.subr.mxu0 0.0
    %1082 = vmatpush1.msra.mxu0 %v972
    %1083 = vmatprep.subr.mxu0 0.0
    %1084 = vmatpush1.msra.mxu0 %v973
    %1085 = vmatprep.subr.mxu0 0.0
    %1086 = vmatpush1.msra.mxu0 0.0
    %1087 = vmatprep.subr.mxu0 0.0
    %1088 = vmatpush1.msra.mxu0 0.0
    %1089 = vmatprep.subr.mxu0 0.0
    %1090 = vmatpush1.msra.mxu0 0.0
    %1091 = vmatprep.subr.mxu0 0.0
    %1092 = vmatpush1.msra.mxu0 0.0
    %1093 = vmatprep.subr.mxu0 0.0
    %1094 = vmatpush1.msra.mxu0 0.0
    %1095 = vmatprep.subr.mxu0 0.0
    %1096 = vmatpush1.msra.mxu0 0.0
    %1097 = vmatprep.subr.mxu0 0.0
    %1098 = vmatpush1.msra.mxu0 0.0
    %1099 = vmatprep.subr.mxu0 0.0
    %1100 = vmatpush1.msra.mxu0 0.0
    %1101 = vmatprep.subr.mxu0 0.0
    %1102 = vmatpush1.msra.mxu0 0.0
    %1103 = vmatprep.subr.mxu0 0.0
    %1104 = vmatpush1.msra.mxu0 0.0
    %1105 = vmatprep.subr.mxu0 0.0
    %1106 = vmatpush1.msra.mxu0 0.0
    %1107 = vmatprep.subr.mxu0 0.0
    %1108 = vmatpush1.msra.mxu0 0.0
    %1109 = vmatprep.subr.mxu0 0.0
    %1110 = vmatpush1.msra.mxu0 0.0
    %1111 = vmatprep.subr.mxu0 0.0
    %1112 = vmatpush1.msra.mxu0 0.0
    %1113 = vmatprep.subr.mxu0 0.0
    %1114 = vmatpush1.msra.mxu0 0.0
    %1115 = vmatprep.subr.mxu0 0.0
    %1116 = vmatpush1.msra.mxu0 0.0
    %1117 = vmatprep.subr.mxu0 0.0
    %1118 = vmatpush1.msra.mxu0 0.0
    %1119 = vmatprep.subr.mxu0 0.0
    %1120 = vmatpush1.msra.mxu0 0.0
    %1121 = vmatprep.subr.mxu0 0.0
    %1122 = vmatpush1.msra.mxu0 0.0
    %1123 = vmatprep.subr.mxu0 0.0
    %1124 = vmatpush1.msra.mxu0 0.0
    %1125 = vmatprep.subr.mxu0 0.0
    %1126 = vmatpush1.msra.mxu0 0.0
    %1127 = vmatprep.subr.mxu0 0.0
    %1128 = vmatpush1.msra.mxu0 0.0
    %1129 = vmatprep.subr.mxu0 0.0
    %1130 = vmatpush1.msra.mxu0 0.0
    %1131 = vmatprep.subr.mxu0 0.0
    %1132 = vmatpush1.msra.mxu0 0.0
    %1133 = vmatprep.subr.mxu0 0.0
    %1134 = vmatpush1.msra.mxu0 0.0
    %1135 = vmatprep.subr.mxu0 0.0
    %1136 = vmatpush1.msra.mxu0 0.0
    %1137 = vmatprep.subr.mxu0 0.0
    %1138 = vmatpush1.msra.mxu0 0.0
    %1139 = vmatprep.subr.mxu0 0.0
    %1140 = vmatpush1.msra.mxu0 0.0
    %1141 = vmatprep.mubr.f32.mxu0 0.0
    %1142 = vmatmul.mubr.f32.gmra.mrb[0].mxu0 %v1066
    %v1143 = vpop.f32.mrb[0].mxu0
    %v1144 = vadd.f32 %v1063, %v1143
    %v1145 = vpop.f32.mrb[0].mxu0
    %1146 = vmatprep.mubr.f32.mxu0 0.0
    %1147 = vmatmul.mubr.f32.gmra.mrb[0].mxu0 %v1069
    %v1148 = vpop.f32.mrb[0].mxu0
    %v1149 = vadd.f32 %v1063, %v1148
    %v1150 = vpop.f32.mrb[0].mxu0
    %1151 = vmatprep.mubr.f32.mxu0 0.0
    %1152 = vmatmul.mubr.f32.gmra.mrb[0].mxu0 %v1072
    %v1153 = vpop.f32.mrb[0].mxu0
    %v1154 = vadd.f32 %v1063, %v1153
    %v1155 = vpop.f32.mrb[0].mxu0
    %1156 = vmatprep.mubr.f32.mxu0 0.0
    %1157 = vmatmul.mubr.f32.gmra.mrb[0].mxu0 %v1075
    %v1158 = vpop.f32.mrb[0].mxu0
    %v1159 = vadd.f32 %v1063, %v1158
    %v1160 = vpop.f32.mrb[0].mxu0
    %1161 = vdwg.mxu0
    %1162 = vmatprep.subr.mxu0 0.0
    %1163 = vmatpush1.msra.mxu0 %v974
    %1164 = vmatprep.subr.mxu0 0.0
    %1165 = vmatpush1.msra.mxu0 %v975
    %1166 = vmatprep.subr.mxu0 0.0
    %1167 = vmatpush1.msra.mxu0 %v976
    %1168 = vmatprep.subr.mxu0 0.0
    %1169 = vmatpush1.msra.mxu0 %v977
    %1170 = vmatprep.subr.mxu0 0.0
    %1171 = vmatpush1.msra.mxu0 0.0
    %1172 = vmatprep.subr.mxu0 0.0
    %1173 = vmatpush1.msra.mxu0 0.0
    %1174 = vmatprep.subr.mxu0 0.0
    %1175 = vmatpush1.msra.mxu0 0.0
    %1176 = vmatprep.subr.mxu0 0.0
    %1177 = vmatpush1.msra.mxu0 0.0
    %1178 = vmatprep.subr.mxu0 0.0
    %1179 = vmatpush1.msra.mxu0 0.0
    %1180 = vmatprep.subr.mxu0 0.0
    %1181 = vmatpush1.msra.mxu0 0.0
    %1182 = vmatprep.subr.mxu0 0.0
    %1183 = vmatpush1.msra.mxu0 0.0
    %1184 = vmatprep.subr.mxu0 0.0
    %1185 = vmatpush1.msra.mxu0 0.0
    %1186 = vmatprep.subr.mxu0 0.0
    %1187 = vmatpush1.msra.mxu0 0.0
    %1188 = vmatprep.subr.mxu0 0.0
    %1189 = vmatpush1.msra.mxu0 0.0
    %1190 = vmatprep.subr.mxu0 0.0
    %1191 = vmatpush1.msra.mxu0 0.0
    %1192 = vmatprep.subr.mxu0 0.0
    %1193 = vmatpush1.msra.mxu0 0.0
    %1194 = vmatprep.subr.mxu0 0.0
    %1195 = vmatpush1.msra.mxu0 0.0
    %1196 = vmatprep.subr.mxu0 0.0
    %1197 = vmatpush1.msra.mxu0 0.0
    %1198 = vmatprep.subr.mxu0 0.0
    %1199 = vmatpush1.msra.mxu0 0.0
    %1200 = vmatprep.subr.mxu0 0.0
    %1201 = vmatpush1.msra.mxu0 0.0
    %1202 = vmatprep.subr.mxu0 0.0
    %1203 = vmatpush1.msra.mxu0 0.0
    %1204 = vmatprep.subr.mxu0 0.0
    %1205 = vmatpush1.msra.mxu0 0.0
    %1206 = vmatprep.subr.mxu0 0.0
    %1207 = vmatpush1.msra.mxu0 0.0
    %1208 = vmatprep.subr.mxu0 0.0
    %1209 = vmatpush1.msra.mxu0 0.0
    %1210 = vmatprep.subr.mxu0 0.0
    %1211 = vmatpush1.msra.mxu0 0.0
    %1212 = vmatprep.subr.mxu0 0.0
    %1213 = vmatpush1.msra.mxu0 0.0
    %1214 = vmatprep.subr.mxu0 0.0
    %1215 = vmatpush1.msra.mxu0 0.0
    %1216 = vmatprep.subr.mxu0 0.0
    %1217 = vmatpush1.msra.mxu0 0.0
    %1218 = vmatprep.subr.mxu0 0.0
    %1219 = vmatpush1.msra.mxu0 0.0
    %1220 = vmatprep.subr.mxu0 0.0
    %1221 = vmatpush1.msra.mxu0 0.0
    %1222 = vmatprep.subr.mxu0 0.0
    %1223 = vmatpush1.msra.mxu0 0.0
    %1224 = vmatprep.subr.mxu0 0.0
    %1225 = vmatpush1.msra.mxu0 0.0
    %1226 = vmatprep.mubr.f32.mxu0 0.0
    %1227 = vmatmul.mubr.f32.gmra.mrb[0].mxu0 %v1066
    %v1228 = vpop.f32.mrb[0].mxu0
    %v1229 = vadd.f32 0.0, %v1228
    %v1230 = vpop.f32.mrb[0].mxu0
    %1231 = vmatprep.mubr.f32.mxu0 0.0
    %1232 = vmatmul.mubr.f32.gmra.mrb[0].mxu0 %v1069
    %v1233 = vpop.f32.mrb[0].mxu0
    %v1234 = vadd.f32 0.0, %v1233
    %v1235 = vpop.f32.mrb[0].mxu0
    %1236 = vmatprep.mubr.f32.mxu0 0.0
    %1237 = vmatmul.mubr.f32.gmra.mrb[0].mxu0 %v1072
    %v1238 = vpop.f32.mrb[0].mxu0
    %v1239 = vadd.f32 0.0, %v1238
    %v1240 = vpop.f32.mrb[0].mxu0
    %1241 = vmatprep.mubr.f32.mxu0 0.0
    %1242 = vmatmul.mubr.f32.gmra.mrb[0].mxu0 %v1075
    %v1243 = vpop.f32.mrb[0].mxu0
    %v1244 = vadd.f32 0.0, %v1243
    %v1245 = vpop.f32.mrb[0].mxu0
    %1246 = vdwg.mxu0
    %v1248 = vsel %vm309, %v1054, 0
    %v1251 = vsel %vm309, %v1059, 0
    %v1254 = vsel %vm309, %v1144, 0
    %v1257 = vsel %vm309, %v1149, 0
    %v1260 = vsel %vm309, %v1154, 0
    %v1263 = vsel %vm309, %v1159, 0
    %1265 = vmatprep.subr.mxu0 0.0
    %1266 = vmatpush1.xpose.msra.mxu0 %v1254
    %1267 = vmatprep.subr.mxu0 0.0
    %1268 = vmatpush1.xpose.msra.mxu0 %v1257
    %1269 = vmatprep.subr.mxu0 0.0
    %1270 = vmatpush1.xpose.msra.mxu0 %v1260
    %1271 = vmatprep.subr.mxu0 0.0
    %1272 = vmatpush1.xpose.msra.mxu0 %v1263
    %1273 = vmatprep.subr.mxu0 0.0
    %1274 = vmatpush1.xpose.msra.mxu0 0.0
    %1275 = vmatprep.subr.mxu0 0.0
    %1276 = vmatpush1.xpose.msra.mxu0 0.0
    %1277 = vmatprep.subr.mxu0 0.0
    %1278 = vmatpush1.xpose.msra.mxu0 0.0
    %1279 = vmatprep.subr.mxu0 0.0
    %1280 = vmatpush1.xpose.msra.mxu0 0.0
    %1281 = vmatprep.subr.mxu0 0.0
    %1282 = vmatpush1.xpose.msra.mxu0 0.0
    %1283 = vmatprep.subr.mxu0 0.0
    %1284 = vmatpush1.xpose.msra.mxu0 0.0
    %1285 = vmatprep.subr.mxu0 0.0
    %1286 = vmatpush1.xpose.msra.mxu0 0.0
    %1287 = vmatprep.subr.mxu0 0.0
    %1288 = vmatpush1.xpose.msra.mxu0 0.0
    %1289 = vmatprep.subr.mxu0 0.0
    %1290 = vmatpush1.xpose.msra.mxu0 0.0
    %1291 = vmatprep.subr.mxu0 0.0
    %1292 = vmatpush1.xpose.msra.mxu0 0.0
    %1293 = vmatprep.subr.mxu0 0.0
    %1294 = vmatpush1.xpose.msra.mxu0 0.0
    %1295 = vmatprep.subr.mxu0 0.0
    %1296 = vmatpush1.xpose.msra.mxu0 0.0
    %1297 = vmatprep.subr.mxu0 0.0
    %1298 = vmatpush1.xpose.msra.mxu0 0.0
    %1299 = vmatprep.subr.mxu0 0.0
    %1300 = vmatpush1.xpose.msra.mxu0 0.0
    %1301 = vmatprep.subr.mxu0 0.0
    %1302 = vmatpush1.xpose.msra.mxu0 0.0
    %1303 = vmatprep.subr.mxu0 0.0
    %1304 = vmatpush1.xpose.msra.mxu0 0.0
    %1305 = vmatprep.subr.mxu0 0.0
    %1306 = vmatpush1.xpose.msra.mxu0 0.0
    %1307 = vmatprep.subr.mxu0 0.0
    %1308 = vmatpush1.xpose.msra.mxu0 0.0
    %1309 = vmatprep.subr.mxu0 0.0
    %1310 = vmatpush1.xpose.msra.mxu0 0.0
    %1311 = vmatprep.subr.mxu0 0.0
    %1312 = vmatpush1.xpose.msra.mxu0 0.0
    %1313 = vmatprep.subr.mxu0 0.0
    %1314 = vmatpush1.xpose.msra.mxu0 0.0
    %1315 = vmatprep.subr.mxu0 0.0
    %1316 = vmatpush1.xpose.msra.mxu0 0.0
    %1317 = vmatprep.subr.mxu0 0.0
    %1318 = vmatpush1.xpose.msra.mxu0 0.0
    %1319 = vmatprep.subr.mxu0 0.0
    %1320 = vmatpush1.xpose.msra.mxu0 0.0
    %1321 = vmatprep.subr.mxu0 0.0
    %1322 = vmatpush1.xpose.msra.mxu0 0.0
    %1323 = vmatprep.subr.mxu0 0.0
    %1324 = vmatpush1.xpose.msra.mxu0 0.0
    %1325 = vmatprep.subr.mxu0 0.0
    %1326 = vmatpush1.xpose.msra.mxu0 0.0
    %1327 = vmatprep.subr.mxu0 0.0
    %1328 = vmatpush1.xpose.msra.mxu0 0.0
    %1329 = vmatprep.mubr.f32.mxu0 0.0
    %1330 = vmatmul.mubr.f32.gmra.mrb[0].mxu0 %v1248
    %v1331 = vpop.f32.mrb[0].mxu0
    %v1332 = vadd.f32 0.0, %v1331
    %v1333 = vpop.f32.mrb[0].mxu0
    %1334 = vmatprep.mubr.f32.mxu0 0.0
    %1335 = vmatmul.mubr.f32.gmra.mrb[0].mxu0 %v1251
    %v1336 = vpop.f32.mrb[0].mxu0
    %v1337 = vadd.f32 0.0, %v1336
    %v1338 = vpop.f32.mrb[0].mxu0
    %1339 = vdwg.mxu0
    %v1340 = vmul.f32 %v1332, 0.35355338
    %v1341 = vmul.f32 %v1337, 0.35355338
    %v1342 = vadd.f32 %v1340, %v54
    %v1343 = vadd.f32 %v1341, %v55
    %v1344 = vsel %vm73, %v1342, -inf
    %1345 = vmax.xlane.f32.xlu0 %v1344
    %v1346 = vpop.xlane.xlu0 %1345
    %v1347 = vsel %vm73, %v1343, -inf
    %1348 = vmax.xlane.f32.xlu0 %v1347
    %v1349 = vpop.xlane.xlu0 %1348
    %v1350 = vsub.f32 %v1342, %v1346
    %v1351 = vsub.f32 %v1343, %v1349
    %v1352 = vmul.f32 %v1350, 1.442695
    %v1353 = vpow.pop %v1352
    %v1354 = vmul.f32 %v1351, 1.442695
    %v1355 = vpow.pop %v1354
    %v1356 = vsel %vm73, %v1353, 0.0
    %1357 = vadd.xlane.f32.xlu0 %v1356
    %v1358 = vpop.xlane.xlu0 %1357
    %v1359 = vsel %vm73, %v1355, 0.0
    %1360 = vadd.xlane.f32.xlu0 %v1359
    %v1361 = vpop.xlane.xlu0 %1360
    %v1362 = vrcp.pop %v1358
    %v1363 = vrcp.pop %v1361
    %v1364 = vmul.f32 %v1353, %v1362
    %v1365 = vmul.f32 %v1355, %v1363
    %1366 = vrot.lane.b32.xlu0 %v1054, 120
    %v1367 = vpop.permute.xlu0 %1366
    %1368 = vrot.lane.b32.xlu0 %v1059, 120
    %v1369 = vpop.permute.xlu0 %1368
    %1370 = vrot.lane.b32.xlu0 %v1144, 120
    %v1371 = vpop.permute.xlu0 %1370
    %1372 = vrot.lane.b32.xlu0 %v1149, 120
    %v1373 = vpop.permute.xlu0 %1372
    %1374 = vrot.lane.b32.xlu0 %v1154, 120
    %v1375 = vpop.permute.xlu0 %1374
    %1376 = vrot.lane.b32.xlu0 %v1159, 120
    %v1377 = vpop.permute.xlu0 %1376
    %v1378 = vsel %vm309, %v1367, 0
    %v1380 = vsel %vm309, %v1369, 0
    %v1382 = vsel %vm309, %v1371, 0
    %v1384 = vsel %vm309, %v1373, 0
    %v1386 = vsel %vm309, %v1375, 0
    %v1388 = vsel %vm309, %v1377, 0
    %1390 = vmatprep.subr.mxu0 0.0
    %1391 = vmatpush1.xpose.msra.mxu0 %v1382
    %1392 = vmatprep.subr.mxu0 0.0
    %1393 = vmatpush1.xpose.msra.mxu0 %v1384
    %1394 = vmatprep.subr.mxu0 0.0
    %1395 = vmatpush1.xpose.msra.mxu0 %v1386
    %1396 = vmatprep.subr.mxu0 0.0
    %1397 = vmatpush1.xpose.msra.mxu0 %v1388
    %1398 = vmatprep.subr.mxu0 0.0
    %1399 = vmatpush1.xpose.msra.mxu0 0.0
    %1400 = vmatprep.subr.mxu0 0.0
    %1401 = vmatpush1.xpose.msra.mxu0 0.0
    %1402 = vmatprep.subr.mxu0 0.0
    %1403 = vmatpush1.xpose.msra.mxu0 0.0
    %1404 = vmatprep.subr.mxu0 0.0
    %1405 = vmatpush1.xpose.msra.mxu0 0.0
    %1406 = vmatprep.subr.mxu0 0.0
    %1407 = vmatpush1.xpose.msra.mxu0 0.0
    %1408 = vmatprep.subr.mxu0 0.0
    %1409 = vmatpush1.xpose.msra.mxu0 0.0
    %1410 = vmatprep.subr.mxu0 0.0
    %1411 = vmatpush1.xpose.msra.mxu0 0.0
    %1412 = vmatprep.subr.mxu0 0.0
    %1413 = vmatpush1.xpose.msra.mxu0 0.0
    %1414 = vmatprep.subr.mxu0 0.0
    %1415 = vmatpush1.xpose.msra.mxu0 0.0
    %1416 = vmatprep.subr.mxu0 0.0
    %1417 = vmatpush1.xpose.msra.mxu0 0.0
    %1418 = vmatprep.subr.mxu0 0.0
    %1419 = vmatpush1.xpose.msra.mxu0 0.0
    %1420 = vmatprep.subr.mxu0 0.0
    %1421 = vmatpush1.xpose.msra.mxu0 0.0
    %1422 = vmatprep.subr.mxu0 0.0
    %1423 = vmatpush1.xpose.msra.mxu0 0.0
    %1424 = vmatprep.subr.mxu0 0.0
    %1425 = vmatpush1.xpose.msra.mxu0 0.0
    %1426 = vmatprep.subr.mxu0 0.0
    %1427 = vmatpush1.xpose.msra.mxu0 0.0
    %1428 = vmatprep.subr.mxu0 0.0
    %1429 = vmatpush1.xpose.msra.mxu0 0.0
    %1430 = vmatprep.subr.mxu0 0.0
    %1431 = vmatpush1.xpose.msra.mxu0 0.0
    %1432 = vmatprep.subr.mxu0 0.0
    %1433 = vmatpush1.xpose.msra.mxu0 0.0
    %1434 = vmatprep.subr.mxu0 0.0
    %1435 = vmatpush1.xpose.msra.mxu0 0.0
    %1436 = vmatprep.subr.mxu0 0.0
    %1437 = vmatpush1.xpose.msra.mxu0 0.0
    %1438 = vmatprep.subr.mxu0 0.0
    %1439 = vmatpush1.xpose.msra.mxu0 0.0
    %1440 = vmatprep.subr.mxu0 0.0
    %1441 = vmatpush1.xpose.msra.mxu0 0.0
    %1442 = vmatprep.subr.mxu0 0.0
    %1443 = vmatpush1.xpose.msra.mxu0 0.0
    %1444 = vmatprep.subr.mxu0 0.0
    %1445 = vmatpush1.xpose.msra.mxu0 0.0
    %1446 = vmatprep.subr.mxu0 0.0
    %1447 = vmatpush1.xpose.msra.mxu0 0.0
    %1448 = vmatprep.subr.mxu0 0.0
    %1449 = vmatpush1.xpose.msra.mxu0 0.0
    %1450 = vmatprep.subr.mxu0 0.0
    %1451 = vmatpush1.xpose.msra.mxu0 0.0
    %1452 = vmatprep.subr.mxu0 0.0
    %1453 = vmatpush1.xpose.msra.mxu0 0.0
    %1454 = vmatprep.mubr.f32.mxu0 0.0
    %1455 = vmatmul.mubr.f32.gmra.mrb[0].mxu0 %v1378
    %v1456 = vpop.f32.mrb[0].mxu0
    %v1457 = vadd.f32 0.0, %v1456
    %v1458 = vpop.f32.mrb[0].mxu0
    %1459 = vmatprep.mubr.f32.mxu0 0.0
    %1460 = vmatmul.mubr.f32.gmra.mrb[0].mxu0 %v1380
    %v1461 = vpop.f32.mrb[0].mxu0
    %v1462 = vadd.f32 0.0, %v1461
    %v1463 = vpop.f32.mrb[0].mxu0
    %1464 = vdwg.mxu0
    %v1465 = vmul.f32 %v1457, 0.35355338
    %v1466 = vmul.f32 %v1462, 0.35355338
    %v1467 = vadd.f32 %v1465, %v54
    %v1468 = vadd.f32 %v1466, %v55
    %v1469 = vsel %vm73, %v1467, -inf
    %1470 = vmax.xlane.f32.xlu0 %v1469
    %v1471 = vpop.xlane.xlu0 %1470
    %v1472 = vsel %vm73, %v1468, -inf
    %1473 = vmax.xlane.f32.xlu0 %v1472
    %v1474 = vpop.xlane.xlu0 %1473
    %v1475 = vsub.f32 %v1467, %v1471
    %v1476 = vsub.f32 %v1468, %v1474
    %v1477 = vmul.f32 %v1475, 1.442695
    %v1478 = vpow.pop %v1477
    %v1479 = vmul.f32 %v1476, 1.442695
    %v1480 = vpow.pop %v1479
    %v1481 = vsel %vm73, %v1478, 0.0
    %1482 = vadd.xlane.f32.xlu0 %v1481
    %v1483 = vpop.xlane.xlu0 %1482
    %v1484 = vsel %vm73, %v1480, 0.0
    %1485 = vadd.xlane.f32.xlu0 %v1484
    %v1486 = vpop.xlane.xlu0 %1485
    %v1487 = vrcp.pop %v1483
    %v1488 = vrcp.pop %v1486
    %v1489 = vmul.f32 %v1478, %v1487
    %v1490 = vmul.f32 %v1480, %v1488
    %1491 = vrot.lane.b32.xlu0 %v1054, 112
    %v1492 = vpop.permute.xlu0 %1491
    %1493 = vrot.lane.b32.xlu0 %v1059, 112
    %v1494 = vpop.permute.xlu0 %1493
    %1495 = vrot.lane.b32.xlu0 %v1144, 112
    %v1496 = vpop.permute.xlu0 %1495
    %1497 = vrot.lane.b32.xlu0 %v1149, 112
    %v1498 = vpop.permute.xlu0 %1497
    %1499 = vrot.lane.b32.xlu0 %v1154, 112
    %v1500 = vpop.permute.xlu0 %1499
    %1501 = vrot.lane.b32.xlu0 %v1159, 112
    %v1502 = vpop.permute.xlu0 %1501
    %v1503 = vsel %vm309, %v1492, 0
    %v1505 = vsel %vm309, %v1494, 0
    %v1507 = vsel %vm309, %v1496, 0
    %v1509 = vsel %vm309, %v1498, 0
    %v1511 = vsel %vm309, %v1500, 0
    %v1513 = vsel %vm309, %v1502, 0
    %1515 = vmatprep.subr.mxu0 0.0
    %1516 = vmatpush1.xpose.msra.mxu0 %v1507
    %1517 = vmatprep.subr.mxu0 0.0
    %1518 = vmatpush1.xpose.msra.mxu0 %v1509
    %1519 = vmatprep.subr.mxu0 0.0
    %1520 = vmatpush1.xpose.msra.mxu0 %v1511
    %1521 = vmatprep.subr.mxu0 0.0
    %1522 = vmatpush1.xpose.msra.mxu0 %v1513
    %1523 = vmatprep.subr.mxu0 0.0
    %1524 = vmatpush1.xpose.msra.mxu0 0.0
    %1525 = vmatprep.subr.mxu0 0.0
    %1526 = vmatpush1.xpose.msra.mxu0 0.0
    %1527 = vmatprep.subr.mxu0 0.0
    %1528 = vmatpush1.xpose.msra.mxu0 0.0
    %1529 = vmatprep.subr.mxu0 0.0
    %1530 = vmatpush1.xpose.msra.mxu0 0.0
    %1531 = vmatprep.subr.mxu0 0.0
    %1532 = vmatpush1.xpose.msra.mxu0 0.0
    %1533 = vmatprep.subr.mxu0 0.0
    %1534 = vmatpush1.xpose.msra.mxu0 0.0
    %1535 = vmatprep.subr.mxu0 0.0
    %1536 = vmatpush1.xpose.msra.mxu0 0.0
    %1537 = vmatprep.subr.mxu0 0.0
    %1538 = vmatpush1.xpose.msra.mxu0 0.0
    %1539 = vmatprep.subr.mxu0 0.0
    %1540 = vmatpush1.xpose.msra.mxu0 0.0
    %1541 = vmatprep.subr.mxu0 0.0
    %1542 = vmatpush1.xpose.msra.mxu0 0.0
    %1543 = vmatprep.subr.mxu0 0.0
    %1544 = vmatpush1.xpose.msra.mxu0 0.0
    %1545 = vmatprep.subr.mxu0 0.0
    %1546 = vmatpush1.xpose.msra.mxu0 0.0
    %1547 = vmatprep.subr.mxu0 0.0
    %1548 = vmatpush1.xpose.msra.mxu0 0.0
    %1549 = vmatprep.subr.mxu0 0.0
    %1550 = vmatpush1.xpose.msra.mxu0 0.0
    %1551 = vmatprep.subr.mxu0 0.0
    %1552 = vmatpush1.xpose.msra.mxu0 0.0
    %1553 = vmatprep.subr.mxu0 0.0
    %1554 = vmatpush1.xpose.msra.mxu0 0.0
    %1555 = vmatprep.subr.mxu0 0.0
    %1556 = vmatpush1.xpose.msra.mxu0 0.0
    %1557 = vmatprep.subr.mxu0 0.0
    %1558 = vmatpush1.xpose.msra.mxu0 0.0
    %1559 = vmatprep.subr.mxu0 0.0
    %1560 = vmatpush1.xpose.msra.mxu0 0.0
    %1561 = vmatprep.subr.mxu0 0.0
    %1562 = vmatpush1.xpose.msra.mxu0 0.0
    %1563 = vmatprep.subr.mxu0 0.0
    %1564 = vmatpush1.xpose.msra.mxu0 0.0
    %1565 = vmatprep.subr.mxu0 0.0
    %1566 = vmatpush1.xpose.msra.mxu0 0.0
    %1567 = vmatprep.subr.mxu0 0.0
    %1568 = vmatpush1.xpose.msra.mxu0 0.0
    %1569 = vmatprep.subr.mxu0 0.0
    %1570 = vmatpush1.xpose.msra.mxu0 0.0
    %1571 = vmatprep.subr.mxu0 0.0
    %1572 = vmatpush1.xpose.msra.mxu0 0.0
    %1573 = vmatprep.subr.mxu0 0.0
    %1574 = vmatpush1.xpose.msra.mxu0 0.0
    %1575 = vmatprep.subr.mxu0 0.0
    %1576 = vmatpush1.xpose.msra.mxu0 0.0
    %1577 = vmatprep.subr.mxu0 0.0
    %1578 = vmatpush1.xpose.msra.mxu0 0.0
    %1579 = vmatprep.mubr.f32.mxu0 0.0
    %1580 = vmatmul.mubr.f32.gmra.mrb[0].mxu0 %v1503
    %v1581 = vpop.f32.mrb[0].mxu0
    %v1582 = vadd.f32 0.0, %v1581
    %v1583 = vpop.f32.mrb[0].mxu0
    %1584 = vmatprep.mubr.f32.mxu0 0.0
    %1585 = vmatmul.mubr.f32.gmra.mrb[0].mxu0 %v1505
    %v1586 = vpop.f32.mrb[0].mxu0
    %v1587 = vadd.f32 0.0, %v1586
    %v1588 = vpop.f32.mrb[0].mxu0
    %1589 = vdwg.mxu0
    %v1590 = vmul.f32 %v1582, 0.35355338
    %v1591 = vmul.f32 %v1587, 0.35355338
    %v1592 = vadd.f32 %v1590, %v54
    %v1593 = vadd.f32 %v1591, %v55
    %v1594 = vsel %vm73, %v1592, -inf
    %1595 = vmax.xlane.f32.xlu0 %v1594
    %v1596 = vpop.xlane.xlu0 %1595
    %v1597 = vsel %vm73, %v1593, -inf
    %1598 = vmax.xlane.f32.xlu0 %v1597
    %v1599 = vpop.xlane.xlu0 %1598
    %v1600 = vsub.f32 %v1592, %v1596
    %v1601 = vsub.f32 %v1593, %v1599
    %v1602 = vmul.f32 %v1600, 1.442695
    %v1603 = vpow.pop %v1602
    %v1604 = vmul.f32 %v1601, 1.442695
    %v1605 = vpow.pop %v1604
    %v1606 = vsel %vm73, %v1603, 0.0
    %1607 = vadd.xlane.f32.xlu0 %v1606
    %v1608 = vpop.xlane.xlu0 %1607
    %v1609 = vsel %vm73, %v1605, 0.0
    %1610 = vadd.xlane.f32.xlu0 %v1609
    %v1611 = vpop.xlane.xlu0 %1610
    %v1612 = vrcp.pop %v1608
    %v1613 = vrcp.pop %v1611
    %v1614 = vmul.f32 %v1603, %v1612
    %v1615 = vmul.f32 %v1605, %v1613
    %1616 = vrot.lane.b32.xlu0 %v1054, 104
    %v1617 = vpop.permute.xlu0 %1616
    %1618 = vrot.lane.b32.xlu0 %v1059, 104
    %v1619 = vpop.permute.xlu0 %1618
    %1620 = vrot.lane.b32.xlu0 %v1144, 104
    %v1621 = vpop.permute.xlu0 %1620
    %1622 = vrot.lane.b32.xlu0 %v1149, 104
    %v1623 = vpop.permute.xlu0 %1622
    %1624 = vrot.lane.b32.xlu0 %v1154, 104
    %v1625 = vpop.permute.xlu0 %1624
    %1626 = vrot.lane.b32.xlu0 %v1159, 104
    %v1627 = vpop.permute.xlu0 %1626
    %v1628 = vsel %vm309, %v1617, 0
    %v1630 = vsel %vm309, %v1619, 0
    %v1632 = vsel %vm309, %v1621, 0
    %v1634 = vsel %vm309, %v1623, 0
    %v1636 = vsel %vm309, %v1625, 0
    %v1638 = vsel %vm309, %v1627, 0
    %1640 = vmatprep.subr.mxu0 0.0
    %1641 = vmatpush1.xpose.msra.mxu0 %v1632
    %1642 = vmatprep.subr.mxu0 0.0
    %1643 = vmatpush1.xpose.msra.mxu0 %v1634
    %1644 = vmatprep.subr.mxu0 0.0
    %1645 = vmatpush1.xpose.msra.mxu0 %v1636
    %1646 = vmatprep.subr.mxu0 0.0
    %1647 = vmatpush1.xpose.msra.mxu0 %v1638
    %1648 = vmatprep.subr.mxu0 0.0
    %1649 = vmatpush1.xpose.msra.mxu0 0.0
    %1650 = vmatprep.subr.mxu0 0.0
    %1651 = vmatpush1.xpose.msra.mxu0 0.0
    %1652 = vmatprep.subr.mxu0 0.0
    %1653 = vmatpush1.xpose.msra.mxu0 0.0
    %1654 = vmatprep.subr.mxu0 0.0
    %1655 = vmatpush1.xpose.msra.mxu0 0.0
    %1656 = vmatprep.subr.mxu0 0.0
    %1657 = vmatpush1.xpose.msra.mxu0 0.0
    %1658 = vmatprep.subr.mxu0 0.0
    %1659 = vmatpush1.xpose.msra.mxu0 0.0
    %1660 = vmatprep.subr.mxu0 0.0
    %1661 = vmatpush1.xpose.msra.mxu0 0.0
    %1662 = vmatprep.subr.mxu0 0.0
    %1663 = vmatpush1.xpose.msra.mxu0 0.0
    %1664 = vmatprep.subr.mxu0 0.0
    %1665 = vmatpush1.xpose.msra.mxu0 0.0
    %1666 = vmatprep.subr.mxu0 0.0
    %1667 = vmatpush1.xpose.msra.mxu0 0.0
    %1668 = vmatprep.subr.mxu0 0.0
    %1669 = vmatpush1.xpose.msra.mxu0 0.0
    %1670 = vmatprep.subr.mxu0 0.0
    %1671 = vmatpush1.xpose.msra.mxu0 0.0
    %1672 = vmatprep.subr.mxu0 0.0
    %1673 = vmatpush1.xpose.msra.mxu0 0.0
    %1674 = vmatprep.subr.mxu0 0.0
    %1675 = vmatpush1.xpose.msra.mxu0 0.0
    %1676 = vmatprep.subr.mxu0 0.0
    %1677 = vmatpush1.xpose.msra.mxu0 0.0
    %1678 = vmatprep.subr.mxu0 0.0
    %1679 = vmatpush1.xpose.msra.mxu0 0.0
    %1680 = vmatprep.subr.mxu0 0.0
    %1681 = vmatpush1.xpose.msra.mxu0 0.0
    %1682 = vmatprep.subr.mxu0 0.0
    %1683 = vmatpush1.xpose.msra.mxu0 0.0
    %1684 = vmatprep.subr.mxu0 0.0
    %1685 = vmatpush1.xpose.msra.mxu0 0.0
    %1686 = vmatprep.subr.mxu0 0.0
    %1687 = vmatpush1.xpose.msra.mxu0 0.0
    %1688 = vmatprep.subr.mxu0 0.0
    %1689 = vmatpush1.xpose.msra.mxu0 0.0
    %1690 = vmatprep.subr.mxu0 0.0
    %1691 = vmatpush1.xpose.msra.mxu0 0.0
    %1692 = vmatprep.subr.mxu0 0.0
    %1693 = vmatpush1.xpose.msra.mxu0 0.0
    %1694 = vmatprep.subr.mxu0 0.0
    %1695 = vmatpush1.xpose.msra.mxu0 0.0
    %1696 = vmatprep.subr.mxu0 0.0
    %1697 = vmatpush1.xpose.msra.mxu0 0.0
    %1698 = vmatprep.subr.mxu0 0.0
    %1699 = vmatpush1.xpose.msra.mxu0 0.0
    %1700 = vmatprep.subr.mxu0 0.0
    %1701 = vmatpush1.xpose.msra.mxu0 0.0
    %1702 = vmatprep.subr.mxu0 0.0
    %1703 = vmatpush1.xpose.msra.mxu0 0.0
    %1704 = vmatprep.mubr.f32.mxu0 0.0
    %1705 = vmatmul.mubr.f32.gmra.mrb[0].mxu0 %v1628
    %v1706 = vpop.f32.mrb[0].mxu0
    %v1707 = vadd.f32 0.0, %v1706
    %v1708 = vpop.f32.mrb[0].mxu0
    %1709 = vmatprep.mubr.f32.mxu0 0.0
    %1710 = vmatmul.mubr.f32.gmra.mrb[0].mxu0 %v1630
    %v1711 = vpop.f32.mrb[0].mxu0
    %v1712 = vadd.f32 0.0, %v1711
    %v1713 = vpop.f32.mrb[0].mxu0
    %1714 = vdwg.mxu0
    %v1715 = vmul.f32 %v1707, 0.35355338
    %v1716 = vmul.f32 %v1712, 0.35355338
    %v1717 = vadd.f32 %v1715, %v54
    %v1718 = vadd.f32 %v1716, %v55
    %v1719 = vsel %vm73, %v1717, -inf
    %1720 = vmax.xlane.f32.xlu0 %v1719
    %v1721 = vpop.xlane.xlu0 %1720
    %v1722 = vsel %vm73, %v1718, -inf
    %1723 = vmax.xlane.f32.xlu0 %v1722
    %v1724 = vpop.xlane.xlu0 %1723
    %v1725 = vsub.f32 %v1717, %v1721
    %v1726 = vsub.f32 %v1718, %v1724
    %v1727 = vmul.f32 %v1725, 1.442695
    %v1728 = vpow.pop %v1727
    %v1729 = vmul.f32 %v1726, 1.442695
    %v1730 = vpow.pop %v1729
    %v1731 = vsel %vm73, %v1728, 0.0
    %1732 = vadd.xlane.f32.xlu0 %v1731
    %v1733 = vpop.xlane.xlu0 %1732
    %v1734 = vsel %vm73, %v1730, 0.0
    %1735 = vadd.xlane.f32.xlu0 %v1734
    %v1736 = vpop.xlane.xlu0 %1735
    %v1737 = vrcp.pop %v1733
    %v1738 = vrcp.pop %v1736
    %v1739 = vmul.f32 %v1728, %v1737
    %v1740 = vmul.f32 %v1730, %v1738
    %1743 = vrot.lane.b32.xlu0 %v1489, 32
    %v1744 = vpop.permute.xlu0 %1743
    %1745 = vrot.lane.b32.xlu0 %v1490, 32
    %v1746 = vpop.permute.xlu0 %1745
    %1751 = vrot.lane.b32.xlu0 %v1614, 64
    %v1752 = vpop.permute.xlu0 %1751
    %1753 = vrot.lane.b32.xlu0 %v1615, 64
    %v1754 = vpop.permute.xlu0 %1753
    %1759 = vrot.lane.b32.xlu0 %v1739, 96
    %v1760 = vpop.permute.xlu0 %1759
    %1761 = vrot.lane.b32.xlu0 %v1740, 96
    %v1762 = vpop.permute.xlu0 %1761
    %v1765 = vsel %vm73, %v1364, %v1744
    %v1766 = vsel %vm73, %v1365, %v1746
    %v1767 = vsel %vm806, %v1765, %v1752
    %v1768 = vsel %vm806, %v1766, %v1754
    %vm1769 = vcmask 785408
    %v1770 = vsel %vm1769, %v1767, %v1760
    %v1771 = vsel %vm1769, %v1768, %v1762
    %1772 = vst [vmem:[%s9] sm:$0xff] %v1770
    %1773 = vst [vmem:[%s9 + $0x8] sm:$0xff] %v1771
    %1778 = vrot.lane.b32.xlu0 %v1229, 96
    %v1779 = vpop.permute.xlu0 %1778
    %1780 = vrot.lane.b32.xlu0 %v1234, 96
    %v1781 = vpop.permute.xlu0 %1780
    %1782 = vrot.lane.b32.xlu0 %v1239, 96
    %v1783 = vpop.permute.xlu0 %1782
    %1784 = vrot.lane.b32.xlu0 %v1244, 96
    %v1785 = vpop.permute.xlu0 %1784
    %1790 = vrot.lane.b32.xlu0 %v1229, 64
    %v1791 = vpop.permute.xlu0 %1790
    %1792 = vrot.lane.b32.xlu0 %v1234, 64
    %v1793 = vpop.permute.xlu0 %1792
    %1794 = vrot.lane.b32.xlu0 %v1239, 64
    %v1795 = vpop.permute.xlu0 %1794
    %1796 = vrot.lane.b32.xlu0 %v1244, 64
    %v1797 = vpop.permute.xlu0 %1796
    %1802 = vrot.lane.b32.xlu0 %v1229, 32
    %v1803 = vpop.permute.xlu0 %1802
    %1804 = vrot.lane.b32.xlu0 %v1234, 32
    %v1805 = vpop.permute.xlu0 %1804
    %1806 = vrot.lane.b32.xlu0 %v1239, 32
    %v1807 = vpop.permute.xlu0 %1806
    %1808 = vrot.lane.b32.xlu0 %v1244, 32
    %v1809 = vpop.permute.xlu0 %1808
    %1814 = vrot.lane.b32.xlu0 %v832, 32
    %v1815 = vpop.permute.xlu0 %1814
    %1817 = vmatprep.subr.mxu0 0.0
    %1818 = vmatpush1.msra.mxu0 %v1229
    %1819 = vmatprep.subr.mxu0 0.0
    %1820 = vmatpush1.msra.mxu0 %v1234
    %1821 = vmatprep.subr.mxu0 0.0
    %1822 = vmatpush1.msra.mxu0 %v1239
    %1823 = vmatprep.subr.mxu0 0.0
    %1824 = vmatpush1.msra.mxu0 %v1244
    %1825 = vmatprep.subr.mxu0 0.0
    %1826 = vmatpush1.msra.mxu0 %v1779
    %1827 = vmatprep.subr.mxu0 0.0
    %1828 = vmatpush1.msra.mxu0 %v1781
    %1829 = vmatprep.subr.mxu0 0.0
    %1830 = vmatpush1.msra.mxu0 %v1783
    %1831 = vmatprep.subr.mxu0 0.0
    %1832 = vmatpush1.msra.mxu0 %v1785
    %1833 = vmatprep.subr.mxu0 0.0
    %1834 = vmatpush1.msra.mxu0 %v1791
    %1835 = vmatprep.subr.mxu0 0.0
    %1836 = vmatpush1.msra.mxu0 %v1793
    %1837 = vmatprep.subr.mxu0 0.0
    %1838 = vmatpush1.msra.mxu0 %v1795
    %1839 = vmatprep.subr.mxu0 0.0
    %1840 = vmatpush1.msra.mxu0 %v1797
    %1841 = vmatprep.subr.mxu0 0.0
    %1842 = vmatpush1.msra.mxu0 %v1803
    %1843 = vmatprep.subr.mxu0 0.0
    %1844 = vmatpush1.msra.mxu0 %v1805
    %1845 = vmatprep.subr.mxu0 0.0
    %1846 = vmatpush1.msra.mxu0 %v1807
    %1847 = vmatprep.subr.mxu0 0.0
    %1848 = vmatpush1.msra.mxu0 %v1809
    %1849 = vmatprep.subr.mxu0 0.0
    %1850 = vmatpush1.msra.mxu0 0.0
    %1851 = vmatprep.subr.mxu0 0.0
    %1852 = vmatpush1.msra.mxu0 0.0
    %1853 = vmatprep.subr.mxu0 0.0
    %1854 = vmatpush1.msra.mxu0 0.0
    %1855 = vmatprep.subr.mxu0 0.0
    %1856 = vmatpush1.msra.mxu0 0.0
    %1857 = vmatprep.subr.mxu0 0.0
    %1858 = vmatpush1.msra.mxu0 0.0
    %1859 = vmatprep.subr.mxu0 0.0
    %1860 = vmatpush1.msra.mxu0 0.0
    %1861 = vmatprep.subr.mxu0 0.0
    %1862 = vmatpush1.msra.mxu0 0.0
    %1863 = vmatprep.subr.mxu0 0.0
    %1864 = vmatpush1.msra.mxu0 0.0
    %1865 = vmatprep.subr.mxu0 0.0
    %1866 = vmatpush1.msra.mxu0 0.0
    %1867 = vmatprep.subr.mxu0 0.0
    %1868 = vmatpush1.msra.mxu0 0.0
    %1869 = vmatprep.subr.mxu0 0.0
    %1870 = vmatpush1.msra.mxu0 0.0
    %1871 = vmatprep.subr.mxu0 0.0
    %1872 = vmatpush1.msra.mxu0 0.0
    %1873 = vmatprep.subr.mxu0 0.0
    %1874 = vmatpush1.msra.mxu0 0.0
    %1875 = vmatprep.subr.mxu0 0.0
    %1876 = vmatpush1.msra.mxu0 0.0
    %1877 = vmatprep.subr.mxu0 0.0
    %1878 = vmatpush1.msra.mxu0 0.0
    %1879 = vmatprep.subr.mxu0 0.0
    %1880 = vmatpush1.msra.mxu0 0.0
    %1881 = vmatprep.mubr.f32.mxu0 0.0
    %1882 = vmatmul.mubr.f32.gmra.mrb[0].mxu0 %v1770
    %v1883 = vpop.f32.mrb[0].mxu0
    %v1884 = vadd.f32 %v1815, %v1883
    %v1885 = vpop.f32.mrb[0].mxu0
    %1886 = vmatprep.mubr.f32.mxu0 0.0
    %1887 = vmatmul.mubr.f32.gmra.mrb[0].mxu0 %v1771
    %v1888 = vpop.f32.mrb[0].mxu0
    %v1889 = vadd.f32 %v1815, %v1888
    %v1890 = vpop.f32.mrb[0].mxu0
    %1891 = vdwg.mxu0
    %v1892 = vadd.f32 %v1884, %v964
    %v1893 = vadd.f32 %v1889, %v965
    %v1894 = vsel %vm73, %v1892, 0.0
    %1895 = vadd.xlane.f32.xlu0 %v1894
    %v1896 = vpop.xlane.xlu0 %1895
    %v1897 = vsel %vm73, %v1893, 0.0
    %1898 = vadd.xlane.f32.xlu0 %v1897
    %v1899 = vpop.xlane.xlu0 %1898
    %v1900 = vmul.f32 %v1896, %v922
    %v1901 = vmul.f32 %v1899, %v922
    %v1902 = vsub.f32 %v1892, %v1900
    %v1903 = vsub.f32 %v1893, %v1901
    %v1904 = vmul.f32 %v1902, %v1902
    %v1905 = vmul.f32 %v1903, %v1903
    %v1906 = vsel %vm73, %v1904, 0.0
    %1907 = vadd.xlane.f32.xlu0 %v1906
    %v1908 = vpop.xlane.xlu0 %1907
    %v1909 = vsel %vm73, %v1905, 0.0
    %1910 = vadd.xlane.f32.xlu0 %v1909
    %v1911 = vpop.xlane.xlu0 %1910
    %v1912 = vmul.f32 %v1908, %v922
    %v1913 = vmul.f32 %v1911, %v922
    %v1914 = vadd.f32 %v1912, 1e-05
    %v1915 = vadd.f32 %v1913, 1e-05
    %v1916 = vrsqrt.pop %v1914
    %v1917 = vrsqrt.pop %v1915
    %v1918 = vmul.f32 %v1902, %v1916
    %v1919 = vmul.f32 %v1903, %v1917
    %v1920 = vlaneseq
    %v1921 = vshrl.u32 %v1920, 7
    %v1922 = vsub.s32 2, %v1921
    %v1923 = vrot.slane %v56, %v1922
    %v1924 = vmul.f32 %v1918, %v1923
    %v1925 = vmul.f32 %v1919, %v1923
    %1927 = vrot.lane.b32.xlu0 %v1923, 96
    %v1928 = vpop.permute.xlu0 %1927
    %v1930 = vadd.f32 %v1924, %v1928
    %v1931 = vadd.f32 %v1925, %v1928
    %v1932 = vmul.f32 %v1930, %v957
    %v1933 = vmul.f32 %v1931, %v962
    %v1934 = vld [vmem:[%s5 + $0xc0] sm:$0xff]
    %v1935 = vld [vmem:[%s5 + $0xc8] sm:$0xff]
    %v1936 = vld [vmem:[%s5 + $0xd0] sm:$0xff]
    %v1937 = vld [vmem:[%s5 + $0xd8] sm:$0xff]
    %v1938 = vld [vmem:[%s5 + $0xe0] sm:$0xff]
    %v1939 = vld [vmem:[%s5 + $0xe8] sm:$0xff]
    %v1940 = vld [vmem:[%s5 + $0xf0] sm:$0xff]
    %v1941 = vld [vmem:[%s5 + $0xf8] sm:$0xff]
    %v1942 = vld [vmem:[%s5 + $0x100] sm:$0xff]
    %v1943 = vld [vmem:[%s5 + $0x108] sm:$0xff]
    %v1944 = vld [vmem:[%s5 + $0x110] sm:$0xff]
    %v1945 = vld [vmem:[%s5 + $0x118] sm:$0xff]
    %v1946 = vlaneseq
    %v1947 = vshrl.u32 %v1946, 7
    %v1948 = vsub.s32 3, %v1947
    %v1949 = vrot.slane %v56, %v1948
    %1951 = vrot.lane.b32.xlu0 %v1949, 96
    %v1952 = vpop.permute.xlu0 %1951
    %v1955 = vsel %vm73, %v1932, 0
    %v1958 = vsel %vm73, %v1933, 0
    %1960 = vmatprep.subr.mxu0 0.0
    %1961 = vmatpush1.msra.mxu0 %v1934
    %1962 = vmatprep.subr.mxu0 0.0
    %1963 = vmatpush1.msra.mxu0 %v1935
    %1964 = vmatprep.subr.mxu0 0.0
    %1965 = vmatpush1.msra.mxu0 %v1936
    %1966 = vmatprep.subr.mxu0 0.0
    %1967 = vmatpush1.msra.mxu0 %v1937
    %1968 = vmatprep.subr.mxu0 0.0
    %1969 = vmatpush1.msra.mxu0 0.0
    %1970 = vmatprep.subr.mxu0 0.0
    %1971 = vmatpush1.msra.mxu0 0.0
    %1972 = vmatprep.subr.mxu0 0.0
    %1973 = vmatpush1.msra.mxu0 0.0
    %1974 = vmatprep.subr.mxu0 0.0
    %1975 = vmatpush1.msra.mxu0 0.0
    %1976 = vmatprep.subr.mxu0 0.0
    %1977 = vmatpush1.msra.mxu0 0.0
    %1978 = vmatprep.subr.mxu0 0.0
    %1979 = vmatpush1.msra.mxu0 0.0
    %1980 = vmatprep.subr.mxu0 0.0
    %1981 = vmatpush1.msra.mxu0 0.0
    %1982 = vmatprep.subr.mxu0 0.0
    %1983 = vmatpush1.msra.mxu0 0.0
    %1984 = vmatprep.subr.mxu0 0.0
    %1985 = vmatpush1.msra.mxu0 0.0
    %1986 = vmatprep.subr.mxu0 0.0
    %1987 = vmatpush1.msra.mxu0 0.0
    %1988 = vmatprep.subr.mxu0 0.0
    %1989 = vmatpush1.msra.mxu0 0.0
    %1990 = vmatprep.subr.mxu0 0.0
    %1991 = vmatpush1.msra.mxu0 0.0
    %1992 = vmatprep.subr.mxu0 0.0
    %1993 = vmatpush1.msra.mxu0 0.0
    %1994 = vmatprep.subr.mxu0 0.0
    %1995 = vmatpush1.msra.mxu0 0.0
    %1996 = vmatprep.subr.mxu0 0.0
    %1997 = vmatpush1.msra.mxu0 0.0
    %1998 = vmatprep.subr.mxu0 0.0
    %1999 = vmatpush1.msra.mxu0 0.0
    %2000 = vmatprep.subr.mxu0 0.0
    %2001 = vmatpush1.msra.mxu0 0.0
    %2002 = vmatprep.subr.mxu0 0.0
    %2003 = vmatpush1.msra.mxu0 0.0
    %2004 = vmatprep.subr.mxu0 0.0
    %2005 = vmatpush1.msra.mxu0 0.0
    %2006 = vmatprep.subr.mxu0 0.0
    %2007 = vmatpush1.msra.mxu0 0.0
    %2008 = vmatprep.subr.mxu0 0.0
    %2009 = vmatpush1.msra.mxu0 0.0
    %2010 = vmatprep.subr.mxu0 0.0
    %2011 = vmatpush1.msra.mxu0 0.0
    %2012 = vmatprep.subr.mxu0 0.0
    %2013 = vmatpush1.msra.mxu0 0.0
    %2014 = vmatprep.subr.mxu0 0.0
    %2015 = vmatpush1.msra.mxu0 0.0
    %2016 = vmatprep.subr.mxu0 0.0
    %2017 = vmatpush1.msra.mxu0 0.0
    %2018 = vmatprep.subr.mxu0 0.0
    %2019 = vmatpush1.msra.mxu0 0.0
    %2020 = vmatprep.subr.mxu0 0.0
    %2021 = vmatpush1.msra.mxu0 0.0
    %2022 = vmatprep.subr.mxu0 0.0
    %2023 = vmatpush1.msra.mxu0 0.0
    %2024 = vmatprep.mubr.f32.mxu0 0.0
    %2025 = vmatmul.mubr.f32.gmra.mrb[0].mxu0 %v1955
    %v2026 = vpop.f32.mrb[0].mxu0
    %v2027 = vadd.f32 %v1952, %v2026
    %v2028 = vpop.f32.mrb[0].mxu0
    %2029 = vmatprep.mubr.f32.mxu0 0.0
    %2030 = vmatmul.mubr.f32.gmra.mrb[0].mxu0 %v1958
    %v2031 = vpop.f32.mrb[0].mxu0
    %v2032 = vadd.f32 %v1952, %v2031
    %v2033 = vpop.f32.mrb[0].mxu0
    %2034 = vdwg.mxu0
    %v2035 = vmax.f32 %v2027, 0.0
    %v2036 = vmax.f32 %v2032, 0.0
    %2037 = vrot.lane.b32.xlu0 %v1923, 64
    %v2038 = vpop.permute.xlu0 %2037
    %v2041 = vsel %vm806, %v2035, 0
    %v2044 = vsel %vm806, %v2036, 0
    %2046 = vmatprep.subr.mxu0 0.0
    %2047 = vmatpush1.msra.mxu0 %v1938
    %2048 = vmatprep.subr.mxu0 0.0
    %2049 = vmatpush1.msra.mxu0 %v1939
    %2050 = vmatprep.subr.mxu0 0.0
    %2051 = vmatpush1.msra.mxu0 %v1940
    %2052 = vmatprep.subr.mxu0 0.0
    %2053 = vmatpush1.msra.mxu0 %v1941
    %2054 = vmatprep.subr.mxu0 0.0
    %2055 = vmatpush1.msra.mxu0 %v1942
    %2056 = vmatprep.subr.mxu0 0.0
    %2057 = vmatpush1.msra.mxu0 %v1943
    %2058 = vmatprep.subr.mxu0 0.0
    %2059 = vmatpush1.msra.mxu0 %v1944
    %2060 = vmatprep.subr.mxu0 0.0
    %2061 = vmatpush1.msra.mxu0 %v1945
    %2062 = vmatprep.subr.mxu0 0.0
    %2063 = vmatpush1.msra.mxu0 0.0
    %2064 = vmatprep.subr.mxu0 0.0
    %2065 = vmatpush1.msra.mxu0 0.0
    %2066 = vmatprep.subr.mxu0 0.0
    %2067 = vmatpush1.msra.mxu0 0.0
    %2068 = vmatprep.subr.mxu0 0.0
    %2069 = vmatpush1.msra.mxu0 0.0
    %2070 = vmatprep.subr.mxu0 0.0
    %2071 = vmatpush1.msra.mxu0 0.0
    %2072 = vmatprep.subr.mxu0 0.0
    %2073 = vmatpush1.msra.mxu0 0.0
    %2074 = vmatprep.subr.mxu0 0.0
    %2075 = vmatpush1.msra.mxu0 0.0
    %2076 = vmatprep.subr.mxu0 0.0
    %2077 = vmatpush1.msra.mxu0 0.0
    %2078 = vmatprep.subr.mxu0 0.0
    %2079 = vmatpush1.msra.mxu0 0.0
    %2080 = vmatprep.subr.mxu0 0.0
    %2081 = vmatpush1.msra.mxu0 0.0
    %2082 = vmatprep.subr.mxu0 0.0
    %2083 = vmatpush1.msra.mxu0 0.0
    %2084 = vmatprep.subr.mxu0 0.0
    %2085 = vmatpush1.msra.mxu0 0.0
    %2086 = vmatprep.subr.mxu0 0.0
    %2087 = vmatpush1.msra.mxu0 0.0
    %2088 = vmatprep.subr.mxu0 0.0
    %2089 = vmatpush1.msra.mxu0 0.0
    %2090 = vmatprep.subr.mxu0 0.0
    %2091 = vmatpush1.msra.mxu0 0.0
    %2092 = vmatprep.subr.mxu0 0.0
    %2093 = vmatpush1.msra.mxu0 0.0
    %2094 = vmatprep.subr.mxu0 0.0
    %2095 = vmatpush1.msra.mxu0 0.0
    %2096 = vmatprep.subr.mxu0 0.0
    %2097 = vmatpush1.msra.mxu0 0.0
    %2098 = vmatprep.subr.mxu0 0.0
    %2099 = vmatpush1.msra.mxu0 0.0
    %2100 = vmatprep.subr.mxu0 0.0
    %2101 = vmatpush1.msra.mxu0 0.0
    %2102 = vmatprep.subr.mxu0 0.0
    %2103 = vmatpush1.msra.mxu0 0.0
    %2104 = vmatprep.subr.mxu0 0.0
    %2105 = vmatpush1.msra.mxu0 0.0
    %2106 = vmatprep.subr.mxu0 0.0
    %2107 = vmatpush1.msra.mxu0 0.0
    %2108 = vmatprep.subr.mxu0 0.0
    %2109 = vmatpush1.msra.mxu0 0.0
    %2110 = vmatprep.mubr.f32.mxu0 0.0
    %2111 = vmatmul.mubr.f32.gmra.mrb[0].mxu0 %v2041
    %v2112 = vpop.f32.mrb[0].mxu0
    %v2113 = vadd.f32 %v2038, %v2112
    %v2114 = vpop.f32.mrb[0].mxu0
    %2115 = vmatprep.mubr.f32.mxu0 0.0
    %2116 = vmatmul.mubr.f32.gmra.mrb[0].mxu0 %v2044
    %v2117 = vpop.f32.mrb[0].mxu0
    %v2118 = vadd.f32 %v2038, %v2117
    %v2119 = vpop.f32.mrb[0].mxu0
    %2120 = vdwg.mxu0
    %v2121 = vadd.f32 %v2113, %v1932
    %v2122 = vadd.f32 %v2118, %v1933
    %v2123 = vsel %vm73, %v2121, 0.0
    %2124 = vadd.xlane.f32.xlu0 %v2123
    %v2125 = vpop.xlane.xlu0 %2124
    %v2126 = vsel %vm73, %v2122, 0.0
    %2127 = vadd.xlane.f32.xlu0 %v2126
    %v2128 = vpop.xlane.xlu0 %2127
    %v2129 = vmul.f32 %v2125, %v922
    %v2130 = vmul.f32 %v2128, %v922
    %v2131 = vsub.f32 %v2121, %v2129
    %v2132 = vsub.f32 %v2122, %v2130
    %v2133 = vmul.f32 %v2131, %v2131
    %v2134 = vmul.f32 %v2132, %v2132
    %v2135 = vsel %vm73, %v2133, 0.0
    %2136 = vadd.xlane.f32.xlu0 %v2135
    %v2137 = vpop.xlane.xlu0 %2136
    %v2138 = vsel %vm73, %v2134, 0.0
    %2139 = vadd.xlane.f32.xlu0 %v2138
    %v2140 = vpop.xlane.xlu0 %2139
    %v2141 = vmul.f32 %v2137, %v922
    %v2142 = vmul.f32 %v2140, %v922
    %v2143 = vadd.f32 %v2141, 1e-05
    %v2144 = vadd.f32 %v2142, 1e-05
    %v2145 = vrsqrt.pop %v2143
    %v2146 = vrsqrt.pop %v2144
    %v2147 = vmul.f32 %v2131, %v2145
    %v2148 = vmul.f32 %v2132, %v2146
    %2149 = vrot.lane.b32.xlu0 %v1923, 32
    %v2150 = vpop.permute.xlu0 %2149
    %v2152 = vmul.f32 %v2147, %v2150
    %v2153 = vmul.f32 %v2148, %v2150
    %v2154 = vadd.f32 %v2152, %v1949
    %v2155 = vadd.f32 %v2153, %v1949
    %v2156 = vmul.f32 %v2154, %v957
    %v2157 = vmul.f32 %v2155, %v962
    %2158 = vst.msk [vmem:[#allocation5] sm:$0xff] %vm73, %v2156
    %2159 = vst.msk [vmem:[#allocation5 + $0x8] sm:$0xff] %vm73, %v2157
    // Predicated region
    $region34: #{decoder_layer.1} parent=1 // pred_check
      _
    $region35: #{decoder_layer.1} parent=1 // pred_check_branch
      %2161 = sbr.rel (0) target = $region37
    $region36: #{decoder_layer.1} parent=1 // pred_region
      %s2163 = ssub.s32 256, 256
      %2164 = vsyncadd [#allocation4], %s2163
      %s2165 = sshll.u32 [#allocation5], 4
      %s2166 = int_to_ptr.vmem [resolvable:$true] %s2165
      %2171 = dma.vmem_to_hbm [thread:$0]  %s2166, 256, %s7, [#allocation4], 128, 128, 8
    $region37: #{decoder_layer.1} parent=1 // pred_fallthru
      _
    // Predicated region
    $region38: #{decoder_layer.1} parent=1 // pred_check
      _
    $region39: #{decoder_layer.1} parent=1 // pred_check_branch
      %2173 = sbr.rel (0) target = $region41
    $region40: #{decoder_layer.1} parent=1 // pred_region
      _
    $region41: #{decoder_layer.1} parent=1 // pred_fallthru
      _
    // Predicated region
    $region42: #{decoder_layer.1} parent=1 // pred_check
      _
    $region43: #{decoder_layer.1} parent=1 // pred_check_branch
      %2175 = sbr.rel (0) target = $region45
    $region44: #{decoder_layer.1} parent=1 // pred_region
      _
    $region45: #{decoder_layer.1} parent=1 // pred_fallthru
      _
    // Predicated region
    $region46: #{decoder_layer.1} parent=1 // pred_check
      _
    $region47: #{decoder_layer.1} parent=1 // pred_check_branch
      %2177 = sbr.rel (0) target = $region49
    $region48: #{decoder_layer.1} parent=1 // pred_region
      %2178 = dma.done [#allocation4], 256
    $region49: #{decoder_layer.1} parent=1 // pred_fallthru
      _
    // Predicated region
    $region50: #{decoder_layer.1} parent=1 // pred_check
      _
    $region51: #{decoder_layer.1} parent=1 // pred_check_branch
      %2180 = sbr.rel (0) target = $region53
    $region52: #{decoder_layer.1} parent=1 // pred_region
      _
    $region53: #{decoder_layer.1} parent=1 // pred_fallthru
      _
    // Predicated region
    $region54: #{decoder_layer.1} parent=1 // pred_check
      _
    $region55: #{decoder_layer.1} parent=1 // pred_check_branch
      %2182 = sbr.rel (0) target = $region57
    $region56: #{decoder_layer.1} parent=1 // pred_region
      _
    $region57: #{decoder_layer.1} parent=1 // pred_fallthru
      _
    %2183 = vsyncpa [#allocation3], 1
    %2184 = vsyncpa [#allocation4], 1

</llo_original>
